<compile_context>
chip_gen: v5e
topology: v5e:2x2
jax: 0.10.0
libtpu: 0.0.40
codegen_flags: <defaults>
</compile_context>

<pallas_src>
import jax
import jax.numpy as jnp
import numpy as np
from jax.experimental import pallas as pl
from jax.experimental.pallas import tpu as pltpu

BN_EPS = 1e-5


# ----------------------------- kernel --------------------------------------
def _pred_mlp_kernel(x_ref, w1_ref, g1_ref, be1_ref, w2_ref, b2_ref, o_ref):
    """One (out-tile j, hidden-tile k) grid step.

    x_ref  : (B, IN)          bf16, resident across the whole grid
    w1_ref : (IN, TILE_H)     bf16, streamed over hidden tiles
    g1/be1 : (1, TILE_H)      f32 BN affine params for this hidden tile
    w2_ref : (TILE_H, TILE_N) bf16, streamed
    b2_ref : (1, TILE_N)      f32
    o_ref  : (B, TILE_N)      f32 output tile, resident across the hidden axis
                              (accumulated directly, no scratch)
    """
    k = pl.program_id(1)

    # ---- linear1 tile: bf16 on the MXU, f32 accumulation -------------------
    # linear1.bias intentionally omitted: under training-mode BN it only shifts
    # the batch mean and cancels exactly.
    h = jnp.dot(x_ref[...], w1_ref[...], preferred_element_type=jnp.float32)

    # ---- BatchNorm1d over the batch axis (full batch resident) -------------
    # Centered two-pass variance (biased), safer than E[h^2] - E[h]^2.
    inv_b = 1.0 / h.shape[0]
    mean = jnp.sum(h, axis=0, keepdims=True) * inv_b
    hc = h - mean
    var = jnp.sum(hc * hc, axis=0, keepdims=True) * inv_b
    scale = g1_ref[...] * jax.lax.rsqrt(var + BN_EPS)
    h = hc * scale + be1_ref[...]

    # ---- ReLU (f32), then bf16 for the second MXU matmul --------------------
    h = jnp.maximum(h, 0.0).astype(jnp.bfloat16)
    y = jnp.dot(h, w2_ref[...], preferred_element_type=jnp.float32)

    # ---- accumulate directly into the resident f32 output tile --------------
    @pl.when(k == 0)
    def _():
        o_ref[...] = (y + b2_ref[...]).astype(o_ref.dtype)

    @pl.when(k > 0)
    def _():
        o_ref[...] = o_ref[...] + y.astype(o_ref.dtype)


# --------------------------- tile / HW selection ---------------------------
def _tpu_hw():
    """(num_tensorcores_per_chip, per-core VMEM capacity in bytes)."""
    vmem_cap = None
    try:
        vmem_cap = int(pltpu.get_tpu_info().vmem_capacity_bytes)
    except Exception:
        vmem_cap = None
    num_tc = 1
    try:
        kind = jax.devices()[0].device_kind.lower()
        if "v7" in kind:
            num_tc = 2
            if vmem_cap is None:
                vmem_cap = 64 << 20
        elif vmem_cap is None:
            vmem_cap = 128 << 20
    except Exception:
        pass
    if vmem_cap is None:
        vmem_cap = 64 << 20  # conservative fallback
    return num_tc, vmem_cap


def _tile_candidates(dim, start=None):
    """Descending tile sizes dividing `dim`: `start` (default full dim), then
    every multiple of 128 that divides `dim`."""
    start = dim if start is None else start
    cands = [start]
    t = 128 * (min(start, dim) // 128)
    while t >= 128:
        if dim % t == 0 and t != start:
            cands.append(t)
        t -= 128
    return cands


def _choose_tiles(B, in_dim, hidden, out_dim, num_tc, vmem_budget):
    """Pick (tile_h, tile_n). Out tiles are split only across physical
    TensorCores (1 on v5e/v6e, 2 on v7x); finer out tiling would serially
    recompute linear1 + BN, so the hidden tile is shrunk first."""
    if num_tc > 1 and out_dim % num_tc == 0 and (out_dim // num_tc) % 128 == 0:
        tn0 = out_dim // num_tc
    else:
        tn0 = out_dim

    def vmem_need(th, tn):
        return (2 * B * in_dim * 2        # x (bf16), pipeline double-buffered
                + 2 * in_dim * th * 2     # W1 tile (bf16)
                + 2 * th * tn * 2         # W2 tile (bf16)
                + 2 * 2 * th * 4          # gamma / beta tiles (f32)
                + 2 * tn * 4              # b2 tile (f32)
                + 2 * B * tn * 4          # output tile (f32)
                + 2 * B * th * 4)         # live f32 `h` intermediate (headroom)

    th_cands = _tile_candidates(hidden)
    tn_cands = _tile_candidates(out_dim, start=tn0)
    for tn in tn_cands:               # prefer the biggest out tile (no redundancy)
        for th in th_cands:           # then the biggest hidden tile that fits
            if vmem_need(th, tn) <= vmem_budget:
                return th, tn
    return th_cands[-1], tn_cands[-1]


# ------------------------------ wrapper -------------------------------------
def prediction_mlp_forward(x, w1, b1, gamma1, beta1, w2, b2,
                           *, tile_h=None, tile_n=None):
    """SimSiam prediction MLP forward (training-mode BN).

    x: (B, in_dim) f32. w1: (in_dim, hidden) = linear1.weight^T.
    w2: (hidden, out_dim) = layer2.weight^T. b1/gamma1/beta1: (1, hidden).
    b2: (1, out_dim).
    """
    del b1  # linear1 bias only shifts the batch mean; cancels exactly in BN.
    # TODO(synk): eval-mode BN (running stats) is not implemented; b1 would be needed.

    B, in_dim = x.shape
    hidden = w1.shape[1]
    out_dim = w2.shape[1]

    num_tc, vmem_cap = _tpu_hw()
    vmem_budget = (vmem_cap * 3) // 4  # headroom for compiler internal scratch

    auto_th, auto_tn = _choose_tiles(B, in_dim, hidden, out_dim, num_tc, vmem_budget)
    tile_h = auto_th if tile_h is None else tile_h
    tile_n = auto_tn if tile_n is None else tile_n
    assert hidden % tile_h == 0 and out_dim % tile_n == 0

    n_out_t = out_dim // tile_n
    n_hid_t = hidden // tile_h
    grid = (n_out_t, n_hid_t)  # (parallel out tiles, hidden reduction innermost)

    # bf16 MXU inputs, f32 accumulation / BN / output.
    x_bf = x.astype(jnp.bfloat16)
    w1_bf = w1.astype(jnp.bfloat16)
    w2_bf = w2.astype(jnp.bfloat16)
    gamma1 = gamma1.astype(jnp.float32)
    beta1 = beta1.astype(jnp.float32)
    b2 = b2.astype(jnp.float32)

    in_specs = [
        pl.BlockSpec((B, in_dim), lambda j, k: (0, 0)),        # x resident
        pl.BlockSpec((in_dim, tile_h), lambda j, k: (0, k)),   # W1 tile
        pl.BlockSpec((1, tile_h), lambda j, k: (0, k)),        # gamma tile
        pl.BlockSpec((1, tile_h), lambda j, k: (0, k)),        # beta tile
        pl.BlockSpec((tile_h, tile_n), lambda j, k: (k, j)),   # W2 tile
        pl.BlockSpec((1, tile_n), lambda j, k: (0, j)),        # b2 tile
    ]
    out_spec = pl.BlockSpec((B, tile_n), lambda j, k: (0, j))  # lane-dense, resident over k

    cost = pl.CostEstimate(
        flops=2 * B * in_dim * hidden * n_out_t + 2 * B * hidden * out_dim,
        transcendentals=hidden * n_out_t,  # rsqrt per BN feature (per out-tile pass)
        bytes_accessed=(B * in_dim * 2
                        + in_dim * hidden * 2 * n_out_t
                        + hidden * out_dim * 2
                        + 2 * hidden * 4 * n_out_t
                        + out_dim * 4
                        + B * out_dim * 4),
    )

    return pl.pallas_call(
        _pred_mlp_kernel,
        out_shape=jax.ShapeDtypeStruct((B, out_dim), jnp.float32),
        grid_spec=pltpu.PrefetchScalarGridSpec(
            num_scalar_prefetch=0,
            grid=grid,
            in_specs=in_specs,
            out_specs=out_spec,
        ),
        compiler_params=pltpu.CompilerParams(
            dimension_semantics=("parallel", "arbitrary"),
            vmem_limit_bytes=int(vmem_budget),
        ),
        cost_estimate=cost,
    )(x_bf, w1_bf, gamma1, beta1, w2_bf, b2)


# ----------------------------- references ----------------------------------
def _reference_f32(x, w1, b1, gamma1, beta1, w2, b2):
    h = x @ w1 + b1
    mean = h.mean(axis=0, keepdims=True)
    var = ((h - mean) ** 2).mean(axis=0, keepdims=True)
    h = (h - mean) / jnp.sqrt(var + BN_EPS) * gamma1 + beta1
    h = jnp.maximum(h, 0.0)
    return h @ w2 + b2


def _reference_matched_precision(x, w1, b1, gamma1, beta1, w2, b2):
    # Same matmul precision as the kernel: bf16 MXU inputs, f32 accumulation.
    h = jnp.dot(x.astype(jnp.bfloat16), w1.astype(jnp.bfloat16),
                preferred_element_type=jnp.float32) + b1
    mean = h.mean(axis=0, keepdims=True)
    var = ((h - mean) ** 2).mean(axis=0, keepdims=True)
    h = (h - mean) * jax.lax.rsqrt(var + BN_EPS) * gamma1 + beta1
    h = jnp.maximum(h, 0.0)
    return jnp.dot(h.astype(jnp.bfloat16), w2.astype(jnp.bfloat16),
                   preferred_element_type=jnp.float32) + b2


if __name__ == "__main__":
    # Small but MXU-aligned shapes consistent with the module's bottleneck
    # structure (in -> hidden -> out).
    B, IN_DIM, HIDDEN_DIM, OUT_DIM = 64, 256, 256, 512

    key = jax.random.PRNGKey(0)
    kx, kw1, kb1, kg, kbe, kw2, kb2 = jax.random.split(key, 7)

    x = jax.random.normal(kx, (B, IN_DIM), dtype=jnp.float32)

    # PyTorch-like Linear init: U(-1/sqrt(fan_in), 1/sqrt(fan_in)).
    bound1 = 1.0 / np.sqrt(IN_DIM)
    w1 = jax.random.uniform(kw1, (IN_DIM, HIDDEN_DIM), jnp.float32, -bound1, bound1)
    b1 = jax.random.uniform(kb1, (1, HIDDEN_DIM), jnp.float32, -bound1, bound1)

    gamma1 = 1.0 + 0.1 * jax.random.normal(kg, (1, HIDDEN_DIM), jnp.float32)
    beta1 = 0.1 * jax.random.normal(kbe, (1, HIDDEN_DIM), jnp.float32)

    bound2 = 1.0 / np.sqrt(HIDDEN_DIM)
    w2 = jax.random.uniform(kw2, (HIDDEN_DIM, OUT_DIM), jnp.float32, -bound2, bound2)
    b2 = jax.random.uniform(kb2, (1, OUT_DIM), jnp.float32, -bound2, bound2)

    ref_m = _reference_matched_precision(x, w1, b1, gamma1, beta1, w2, b2)
    ref_f32 = _reference_f32(x, w1, b1, gamma1, beta1, w2, b2)

    # 1) Auto tile selection (full hidden / generation-aware out tile; on a
    #    single-TC chip this collapses the grid to a single step).
    out = prediction_mlp_forward(x, w1, b1, gamma1, beta1, w2, b2)
    out = jax.block_until_ready(out)
    np.testing.assert_allclose(np.asarray(out), np.asarray(ref_m),
                               rtol=2e-3, atol=2e-3)
    np.testing.assert_allclose(np.asarray(out), np.asarray(ref_f32),
                               rtol=5e-2, atol=5e-2)

    # 2) Forced small tiles: exercises the hidden-reduction accumulation path
    #    (k > 0 branch) and multiple out tiles.
    out2 = prediction_mlp_forward(x, w1, b1, gamma1, beta1, w2, b2,
                                  tile_h=128, tile_n=256)
    out2 = jax.block_until_ready(out2)
    np.testing.assert_allclose(np.asarray(out2), np.asarray(ref_m),
                               rtol=2e-3, atol=2e-3)

    print("KERNEL_OK")
</pallas_src>

<mosaic_0001>
module attributes {stable_mosaic.version = 11 : i64} {
  func.func @_pred_mlp_kernel(%arg0: i32, %arg1: i32, %arg2: memref<64x256xbf16, #tpu.memory_space<vmem>>, %arg3: memref<256x256xbf16, #tpu.memory_space<vmem>>, %arg4: memref<1x256xf32, #tpu.memory_space<vmem>>, %arg5: memref<1x256xf32, #tpu.memory_space<vmem>>, %arg6: memref<256x512xbf16, #tpu.memory_space<vmem>>, %arg7: memref<1x512xf32, #tpu.memory_space<vmem>>, %arg8: memref<64x512xf32, #tpu.memory_space<vmem>>) attributes {dimension_semantics = [#tpu.dimension_semantics<parallel>, #tpu.dimension_semantics<arbitrary>], iteration_bounds = array<i64: 1, 1>, scalar_prefetch = 0 : i64, scratch_operands = 0 : i64, tpu.core_type = #tpu.core_type<tc>, window_params = [{pipeline_mode = #tpu.pipeline_mode<synchronous>, transform_indices = @transform_0, window_bounds = array<i64: 64, 256>}, {transform_indices = @transform_1, window_bounds = array<i64: 256, 256>}, {transform_indices = @transform_2, window_bounds = array<i64: 1, 256>}, {transform_indices = @transform_3, window_bounds = array<i64: 1, 256>}, {transform_indices = @transform_4, window_bounds = array<i64: 256, 512>}, {transform_indices = @transform_5, window_bounds = array<i64: 1, 512>}, {transform_indices = @transform_6, window_bounds = array<i64: 64, 512>}]} {
    %c0 = arith.constant 0 : index
    %c0_0 = arith.constant 0 : index
    %0 = vector.load %arg2[%c0, %c0_0] : memref<64x256xbf16, #tpu.memory_space<vmem>>, vector<64x256xbf16>
    %c0_1 = arith.constant 0 : index
    %c0_2 = arith.constant 0 : index
    %1 = vector.load %arg3[%c0_1, %c0_2] : memref<256x256xbf16, #tpu.memory_space<vmem>>, vector<256x256xbf16>
    %cst = arith.constant dense<0.000000e+00> : vector<64x256xf32>
    %2 = tpu.matmul %0, %1, %cst {dimension_numbers = #tpu.dot_dimension_numbers<[1], [0], [0], [1], [0, 0, 1, 1], [], []>} : vector<64x256xbf16>, vector<256x256xbf16>, vector<64x256xf32> -> vector<64x256xf32>
    %cst_3 = arith.constant dense<0.000000e+00> : vector<256xf32>
    %3 = vector.multi_reduction <add>, %2, %cst_3 [0] : vector<64x256xf32> to vector<256xf32>
    %4 = vector.shape_cast %3 : vector<256xf32> to vector<1x256xf32>
    %cst_4 = arith.constant 1.562500e-02 : f32
    %5 = vector.broadcast %cst_4 : f32 to vector<1x256xf32>
    %6 = arith.mulf %4, %5 : vector<1x256xf32>
    %7 = vector.broadcast %6 : vector<1x256xf32> to vector<64x256xf32>
    %8 = arith.subf %2, %7 : vector<64x256xf32>
    %9 = arith.mulf %8, %8 : vector<64x256xf32>
    %cst_5 = arith.constant dense<0.000000e+00> : vector<256xf32>
    %10 = vector.multi_reduction <add>, %9, %cst_5 [0] : vector<64x256xf32> to vector<256xf32>
    %11 = vector.shape_cast %10 : vector<256xf32> to vector<1x256xf32>
    %cst_6 = arith.constant 1.562500e-02 : f32
    %12 = vector.broadcast %cst_6 : f32 to vector<1x256xf32>
    %13 = arith.mulf %11, %12 : vector<1x256xf32>
    %c0_7 = arith.constant 0 : index
    %c0_8 = arith.constant 0 : index
    %14 = vector.load %arg4[%c0_7, %c0_8] : memref<1x256xf32, #tpu.memory_space<vmem>>, vector<1x256xf32>
    %cst_9 = arith.constant 9.99999974E-6 : f32
    %15 = vector.broadcast %cst_9 : f32 to vector<1x256xf32>
    %16 = arith.addf %13, %15 : vector<1x256xf32>
    %17 = math.rsqrt %16 : vector<1x256xf32>
    %18 = arith.mulf %14, %17 : vector<1x256xf32>
    %19 = vector.broadcast %18 : vector<1x256xf32> to vector<64x256xf32>
    %20 = arith.mulf %8, %19 : vector<64x256xf32>
    %c0_10 = arith.constant 0 : index
    %c0_11 = arith.constant 0 : index
    %21 = vector.load %arg5[%c0_10, %c0_11] : memref<1x256xf32, #tpu.memory_space<vmem>>, vector<1x256xf32>
    %22 = vector.broadcast %21 : vector<1x256xf32> to vector<64x256xf32>
    %23 = arith.addf %20, %22 : vector<64x256xf32>
    %cst_12 = arith.constant 0.000000e+00 : f32
    %24 = vector.broadcast %cst_12 : f32 to vector<64x256xf32>
    %25 = arith.maximumf %23, %24 : vector<64x256xf32>
    %26 = arith.truncf %25 : vector<64x256xf32> to vector<64x256xbf16>
    %c0_13 = arith.constant 0 : index
    %c0_14 = arith.constant 0 : index
    %27 = vector.load %arg6[%c0_13, %c0_14] : memref<256x512xbf16, #tpu.memory_space<vmem>>, vector<256x512xbf16>
    %cst_15 = arith.constant dense<0.000000e+00> : vector<64x512xf32>
    %28 = tpu.matmul %26, %27, %cst_15 {dimension_numbers = #tpu.dot_dimension_numbers<[1], [0], [0], [1], [0, 0, 1, 1], [], []>} : vector<64x256xbf16>, vector<256x512xbf16>, vector<64x512xf32> -> vector<64x512xf32>
    %c0_i32 = arith.constant 0 : i32
    %29 = arith.cmpi eq, %arg1, %c0_i32 : i32
    %30 = arith.extui %29 : i1 to i32
    %c0_i32_16 = arith.constant 0 : i32
    %31 = arith.cmpi ne, %30, %c0_i32_16 : i32
    scf.if %31 {
      %c0_19 = arith.constant 0 : index
      %c0_20 = arith.constant 0 : index
      %35 = vector.load %arg7[%c0_19, %c0_20] : memref<1x512xf32, #tpu.memory_space<vmem>>, vector<1x512xf32>
      %36 = vector.broadcast %35 : vector<1x512xf32> to vector<64x512xf32>
      %37 = arith.addf %28, %36 : vector<64x512xf32>
      %c0_21 = arith.constant 0 : index
      %c0_22 = arith.constant 0 : index
      %38 = vector.load %arg8[%c0_21, %c0_22] : memref<64x512xf32, #tpu.memory_space<vmem>>, vector<64x512xf32>
      tpu.vector_store %arg8[%c0_21, %c0_22], %37 {strides = array<i32>} : memref<64x512xf32, #tpu.memory_space<vmem>>, vector<64x512xf32>,
    } else {
    }
    %c0_i32_17 = arith.constant 0 : i32
    %32 = arith.cmpi sgt, %arg1, %c0_i32_17 : i32
    %33 = arith.extui %32 : i1 to i32
    %c0_i32_18 = arith.constant 0 : i32
    %34 = arith.cmpi ne, %33, %c0_i32_18 : i32
    scf.if %34 {
      %c0_19 = arith.constant 0 : index
      %c0_20 = arith.constant 0 : index
      %35 = vector.load %arg8[%c0_19, %c0_20] : memref<64x512xf32, #tpu.memory_space<vmem>>, vector<64x512xf32>
      %36 = arith.addf %35, %28 : vector<64x512xf32>
      %c0_21 = arith.constant 0 : index
      %c0_22 = arith.constant 0 : index
      %37 = vector.load %arg8[%c0_21, %c0_22] : memref<64x512xf32, #tpu.memory_space<vmem>>, vector<64x512xf32>
      tpu.vector_store %arg8[%c0_21, %c0_22], %36 {strides = array<i32>} : memref<64x512xf32, #tpu.memory_space<vmem>>, vector<64x512xf32>,
    } else {
    }
    return
  }
  func.func @transform_0(%arg0: i32, %arg1: i32) -> (i32, i32) {
    %c0_i32 = arith.constant 0 : i32
    %c0_i32_0 = arith.constant 0 : i32
    %c0_i32_1 = arith.constant 0 : i32
    return %c0_i32, %c0_i32_0 : i32, i32
  }
  func.func @transform_1(%arg0: i32, %arg1: i32) -> (i32, i32) {
    %c0_i32 = arith.constant 0 : i32
    %c0_i32_0 = arith.constant 0 : i32
    return %c0_i32, %arg1 : i32, i32
  }
  func.func @transform_2(%arg0: i32, %arg1: i32) -> (i32, i32) {
    %c0_i32 = arith.constant 0 : i32
    %c0_i32_0 = arith.constant 0 : i32
    return %c0_i32, %arg1 : i32, i32
  }
  func.func @transform_3(%arg0: i32, %arg1: i32) -> (i32, i32) {
    %c0_i32 = arith.constant 0 : i32
    %c0_i32_0 = arith.constant 0 : i32
    return %c0_i32, %arg1 : i32, i32
  }
  func.func @transform_4(%arg0: i32, %arg1: i32) -> (i32, i32) {
    %c0_i32 = arith.constant 0 : i32
    return %arg1, %arg0 : i32, i32
  }
  func.func @transform_5(%arg0: i32, %arg1: i32) -> (i32, i32) {
    %c0_i32 = arith.constant 0 : i32
    %c0_i32_0 = arith.constant 0 : i32
    return %c0_i32, %arg0 : i32, i32
  }
  func.func @transform_6(%arg0: i32, %arg1: i32) -> (i32, i32) {
    %c0_i32 = arith.constant 0 : i32
    %c0_i32_0 = arith.constant 0 : i32
    return %c0_i32, %arg0 : i32, i32
  }
}

</mosaic_0001>

<llo_original>
// kernel: tpu_custom_call.1
$region0: #{tpu_custom_call.1}
  #allocation0 [shape = 'u32[]', space=smem, size = 0x4, offset = 0x4, fixed_abs, tag = 'smem constant byte address 0x4 - core index']
  #allocation1 [shape = 'u32[72,128]{1,0:T(1,128)}', space=vmem, size = 0x9000, scoped, tag = 'internal scratch']
  %s0 = inlined_call_operand.hbm [shape: bf16[64,256], index: 0, kind: input, shape index: {}]
  %s1 = inlined_call_operand.hbm [shape: bf16[256,256], index: 1, kind: input, shape index: {}]
  %s2 = inlined_call_operand.hbm [shape: f32[1,256], index: 2, kind: input, shape index: {}]
  %s3 = inlined_call_operand.hbm [shape: f32[1,256], index: 3, kind: input, shape index: {}]
  %s4 = inlined_call_operand.hbm [shape: bf16[256,512], index: 4, kind: input, shape index: {}]
  %s5 = inlined_call_operand.vmem [shape: f32[1,512], index: 5, kind: input, shape index: {}]
  %s6 = inlined_call_operand.hbm [shape: f32[64,512], index: 6, kind: output, shape index: {}]
  %s7 = sld [smem:[#allocation0]]
  $region62: #{tpu_custom_call.1} parent=0
    _
  %s9 = ssub.s32 1, %s7
  %s10 = scalar_select 0, %s9, %s7
  $region1: #{tpu_custom_call.1} parent=0
    #allocation2 [shape = 'u8[32768]{0}', space=vmem, size = 0x8000, scoped, tag = 'input window, operand 0, single buffered']
    #allocation3 [shape = 's32[1]{0}', space=sflag, size = 0x4, scoped, tag = 'scoped memory for tpu_custom_call.1']
    #allocation4 [shape = 's32[1]{0}', space=sflag, size = 0x4, scoped, tag = 'scoped memory for tpu_custom_call.1']
    #allocation5 [shape = 'u8[131072]{0}', space=vmem, size = 0x20000, scoped, tag = 'input window, operand 1, single buffered']
    #allocation6 [shape = 's32[1]{0}', space=sflag, size = 0x4, scoped, tag = 'scoped memory for tpu_custom_call.1']
    #allocation7 [shape = 'u8[1024]{0}', space=vmem, size = 0x400, scoped, tag = 'input window, operand 2, single buffered']
    #allocation8 [shape = 'u8[1024]{0}', space=vmem, size = 0x400, scoped, tag = 'input window, operand 3, single buffered']
    #allocation9 [shape = 's32[1]{0}', space=sflag, size = 0x4, scoped, tag = 'scoped memory for tpu_custom_call.1']
    #allocation10 [shape = 'u8[262144]{0}', space=vmem, size = 0x40000, scoped, tag = 'input window, operand 4, single buffered']
    #allocation11 [shape = 'u8[131072]{0}', space=vmem, size = 0x20000, scoped, tag = 'output window, operand 0, single buffered']
    %11 = vsyncpa [#allocation3], 0
    %12 = vsyncpa [#allocation6], 0
    %13 = vsyncpa [#allocation9], 0
    %14 = vsyncpa [#allocation4], 0
    // Predicated region
    $region2: #{tpu_custom_call.1} parent=1 // pred_check
      _
    $region3: #{tpu_custom_call.1} parent=1 // pred_check_branch
      %16 = sbr.rel (0) target = $region5
    $region4: #{tpu_custom_call.1} parent=1 // pred_region
      %18 = vsyncadd [#allocation3], 0
      %s19 = sshll.u32 %s0, 4
      %s20 = int_to_ptr.hbm [resolvable:$true] %s19
      %s21 = sshll.u32 [#allocation2], 4
      %s22 = int_to_ptr.vmem [resolvable:$true] %s21
      %27 = dma.hbm_to_vmem [thread:$0]  %s20, 1024, %s22, [#allocation3], 128, 128, 8
    $region5: #{tpu_custom_call.1} parent=1 // pred_fallthru
      _
    // Predicated region
    $region6: #{tpu_custom_call.1} parent=1 // pred_check
      _
    $region7: #{tpu_custom_call.1} parent=1 // pred_check_branch
      %29 = sbr.rel (0) target = $region9
    $region8: #{tpu_custom_call.1} parent=1 // pred_region
      %31 = vsyncadd [#allocation6], 0
      %s32 = sshll.u32 %s1, 4
      %s33 = int_to_ptr.hbm [resolvable:$true] %s32
      %s34 = sshll.u32 [#allocation5], 4
      %s35 = int_to_ptr.vmem [resolvable:$true] %s34
      %40 = dma.hbm_to_vmem [thread:$0]  %s33, 4096, %s35, [#allocation6], 128, 128, 8
    $region9: #{tpu_custom_call.1} parent=1 // pred_fallthru
      _
    // Predicated region
    $region10: #{tpu_custom_call.1} parent=1 // pred_check
      _
    $region11: #{tpu_custom_call.1} parent=1 // pred_check_branch
      %42 = sbr.rel (0) target = $region13
    $region12: #{tpu_custom_call.1} parent=1 // pred_region
      %44 = vsyncadd [#allocation6], 0
      %s46 = sshll.u32 %s2, 4
      %s47 = int_to_ptr.hbm [resolvable:$true] %s46
      %s48 = sshll.u32 [#allocation7], 4
      %s49 = int_to_ptr.vmem [resolvable:$true] %s48
      %51 = dma.hbm_to_vmem [thread:$0]  %s47, 32, %s49, [#allocation6]
    $region13: #{tpu_custom_call.1} parent=1 // pred_fallthru
      _
    // Predicated region
    $region14: #{tpu_custom_call.1} parent=1 // pred_check
      _
    $region15: #{tpu_custom_call.1} parent=1 // pred_check_branch
      %53 = sbr.rel (0) target = $region17
    $region16: #{tpu_custom_call.1} parent=1 // pred_region
      %55 = vsyncadd [#allocation9], 0
      %s57 = sshll.u32 %s3, 4
      %s58 = int_to_ptr.hbm [resolvable:$true] %s57
      %s59 = sshll.u32 [#allocation8], 4
      %s60 = int_to_ptr.vmem [resolvable:$true] %s59
      %62 = dma.hbm_to_vmem [thread:$0]  %s58, 32, %s60, [#allocation9]
    $region17: #{tpu_custom_call.1} parent=1 // pred_fallthru
      _
    // Predicated region
    $region18: #{tpu_custom_call.1} parent=1 // pred_check
      _
    $region19: #{tpu_custom_call.1} parent=1 // pred_check_branch
      %64 = sbr.rel (0) target = $region21
    $region20: #{tpu_custom_call.1} parent=1 // pred_region
      %66 = vsyncadd [#allocation9], 0
      %s67 = sshll.u32 %s4, 4
      %s68 = int_to_ptr.hbm [resolvable:$true] %s67
      %s69 = sshll.u32 [#allocation10], 4
      %s70 = int_to_ptr.vmem [resolvable:$true] %s69
      %75 = dma.hbm_to_vmem [thread:$0]  %s68, 8192, %s70, [#allocation9], 256, 256, 16
    $region21: #{tpu_custom_call.1} parent=1 // pred_fallthru
      _
    // Predicated region
    $region22: #{tpu_custom_call.1} parent=1 // pred_check
      _
    $region23: #{tpu_custom_call.1} parent=1 // pred_check_branch
      %77 = sbr.rel (0) target = $region25
    $region24: #{tpu_custom_call.1} parent=1 // pred_region
      _
    $region25: #{tpu_custom_call.1} parent=1 // pred_fallthru
      _
    // Predicated region
    $region26: #{tpu_custom_call.1} parent=1 // pred_check
      _
    $region27: #{tpu_custom_call.1} parent=1 // pred_check_branch
      %79 = sbr.rel (0) target = $region29
    $region28: #{tpu_custom_call.1} parent=1 // pred_region
      %81 = dma.done [#allocation3], 1024
    $region29: #{tpu_custom_call.1} parent=1 // pred_fallthru
      _
    // Predicated region
    $region30: #{tpu_custom_call.1} parent=1 // pred_check
      _
    $region31: #{tpu_custom_call.1} parent=1 // pred_check_branch
      %83 = sbr.rel (0) target = $region33
    $region32: #{tpu_custom_call.1} parent=1 // pred_region
      %85 = dma.done [#allocation6], 4096
    $region33: #{tpu_custom_call.1} parent=1 // pred_fallthru
      _
    // Predicated region
    $region34: #{tpu_custom_call.1} parent=1 // pred_check
      _
    $region35: #{tpu_custom_call.1} parent=1 // pred_check_branch
      %87 = sbr.rel (0) target = $region37
    $region36: #{tpu_custom_call.1} parent=1 // pred_region
      %89 = dma.done [#allocation6], 32
    $region37: #{tpu_custom_call.1} parent=1 // pred_fallthru
      _
    // Predicated region
    $region38: #{tpu_custom_call.1} parent=1 // pred_check
      _
    $region39: #{tpu_custom_call.1} parent=1 // pred_check_branch
      %91 = sbr.rel (0) target = $region41
    $region40: #{tpu_custom_call.1} parent=1 // pred_region
      %93 = dma.done [#allocation9], 32
    $region41: #{tpu_custom_call.1} parent=1 // pred_fallthru
      _
    // Predicated region
    $region42: #{tpu_custom_call.1} parent=1 // pred_check
      _
    $region43: #{tpu_custom_call.1} parent=1 // pred_check_branch
      %95 = sbr.rel (0) target = $region45
    $region44: #{tpu_custom_call.1} parent=1 // pred_region
      %97 = dma.done [#allocation9], 8192
    $region45: #{tpu_custom_call.1} parent=1 // pred_fallthru
      _
    %v98 = vld [vmem:[#allocation2] sm:$0xff]
    %v99 = vld [vmem:[#allocation2 + $0x8] sm:$0xff]
    %v100 = vld [vmem:[#allocation2 + $0x10] sm:$0xff]
    %v101 = vld [vmem:[#allocation2 + $0x18] sm:$0xff]
    %v102 = vld [vmem:[#allocation2 + $0x20] sm:$0xff]
    %v103 = vld [vmem:[#allocation2 + $0x28] sm:$0xff]
    %v104 = vld [vmem:[#allocation2 + $0x30] sm:$0xff]
    %v105 = vld [vmem:[#allocation2 + $0x38] sm:$0xff]
    %v106 = vld [vmem:[#allocation5] sm:$0xff]
    %v107 = vld [vmem:[#allocation5 + $0x8] sm:$0xff]
    %v108 = vld [vmem:[#allocation5 + $0x10] sm:$0xff]
    %v109 = vld [vmem:[#allocation5 + $0x18] sm:$0xff]
    %v110 = vld [vmem:[#allocation5 + $0x20] sm:$0xff]
    %v111 = vld [vmem:[#allocation5 + $0x28] sm:$0xff]
    %v112 = vld [vmem:[#allocation5 + $0x30] sm:$0xff]
    %v113 = vld [vmem:[#allocation5 + $0x38] sm:$0xff]
    %v114 = vld [vmem:[#allocation5 + $0x40] sm:$0xff]
    %v115 = vld [vmem:[#allocation5 + $0x48] sm:$0xff]
    %v116 = vld [vmem:[#allocation5 + $0x50] sm:$0xff]
    %v117 = vld [vmem:[#allocation5 + $0x58] sm:$0xff]
    %v118 = vld [vmem:[#allocation5 + $0x60] sm:$0xff]
    %v119 = vld [vmem:[#allocation5 + $0x68] sm:$0xff]
    %v120 = vld [vmem:[#allocation5 + $0x70] sm:$0xff]
    %v121 = vld [vmem:[#allocation5 + $0x78] sm:$0xff]
    %v122 = vld [vmem:[#allocation5 + $0x80] sm:$0xff]
    %v123 = vld [vmem:[#allocation5 + $0x88] sm:$0xff]
    %v124 = vld [vmem:[#allocation5 + $0x90] sm:$0xff]
    %v125 = vld [vmem:[#allocation5 + $0x98] sm:$0xff]
    %v126 = vld [vmem:[#allocation5 + $0xa0] sm:$0xff]
    %v127 = vld [vmem:[#allocation5 + $0xa8] sm:$0xff]
    %v128 = vld [vmem:[#allocation5 + $0xb0] sm:$0xff]
    %v129 = vld [vmem:[#allocation5 + $0xb8] sm:$0xff]
    %v130 = vld [vmem:[#allocation5 + $0xc0] sm:$0xff]
    %v131 = vld [vmem:[#allocation5 + $0xc8] sm:$0xff]
    %v132 = vld [vmem:[#allocation5 + $0xd0] sm:$0xff]
    %v133 = vld [vmem:[#allocation5 + $0xd8] sm:$0xff]
    %v134 = vld [vmem:[#allocation5 + $0xe0] sm:$0xff]
    %v135 = vld [vmem:[#allocation5 + $0xe8] sm:$0xff]
    %v136 = vld [vmem:[#allocation5 + $0xf0] sm:$0xff]
    %v137 = vld [vmem:[#allocation5 + $0xf8] sm:$0xff]
    %v146 = vunpack.c.l.b16 %v98
    %v147 = vunpack.c.h.b16 %v98
    %v148 = vunpack.c.l.b16 %v99
    %v149 = vunpack.c.h.b16 %v99
    %v150 = vunpack.c.l.b16 %v100
    %v151 = vunpack.c.h.b16 %v100
    %v152 = vunpack.c.l.b16 %v101
    %v153 = vunpack.c.h.b16 %v101
    %v154 = vunpack.c.l.b16 %v102
    %v155 = vunpack.c.h.b16 %v102
    %v156 = vunpack.c.l.b16 %v103
    %v157 = vunpack.c.h.b16 %v103
    %v158 = vunpack.c.l.b16 %v104
    %v159 = vunpack.c.h.b16 %v104
    %v160 = vunpack.c.l.b16 %v105
    %v161 = vunpack.c.h.b16 %v105
    %v162 = vpack.c.b16 %v148, %v146
    %v163 = vpack.c.b16 %v149, %v147
    %v164 = vpack.c.b16 %v152, %v150
    %v165 = vpack.c.b16 %v153, %v151
    %v166 = vpack.c.b16 %v156, %v154
    %v167 = vpack.c.b16 %v157, %v155
    %v168 = vpack.c.b16 %v160, %v158
    %v169 = vpack.c.b16 %v161, %v159
    %v210 = vunpack.c.l.b16 %v106
    %v211 = vunpack.c.h.b16 %v106
    %v212 = vunpack.c.l.b16 %v107
    %v213 = vunpack.c.h.b16 %v107
    %v214 = vunpack.c.l.b16 %v108
    %v215 = vunpack.c.h.b16 %v108
    %v216 = vunpack.c.l.b16 %v109
    %v217 = vunpack.c.h.b16 %v109
    %v218 = vunpack.c.l.b16 %v110
    %v219 = vunpack.c.h.b16 %v110
    %v220 = vunpack.c.l.b16 %v111
    %v221 = vunpack.c.h.b16 %v111
    %v222 = vunpack.c.l.b16 %v112
    %v223 = vunpack.c.h.b16 %v112
    %v224 = vunpack.c.l.b16 %v113
    %v225 = vunpack.c.h.b16 %v113
    %v226 = vunpack.c.l.b16 %v114
    %v227 = vunpack.c.h.b16 %v114
    %v228 = vunpack.c.l.b16 %v115
    %v229 = vunpack.c.h.b16 %v115
    %v230 = vunpack.c.l.b16 %v116
    %v231 = vunpack.c.h.b16 %v116
    %v232 = vunpack.c.l.b16 %v117
    %v233 = vunpack.c.h.b16 %v117
    %v234 = vunpack.c.l.b16 %v118
    %v235 = vunpack.c.h.b16 %v118
    %v236 = vunpack.c.l.b16 %v119
    %v237 = vunpack.c.h.b16 %v119
    %v238 = vunpack.c.l.b16 %v120
    %v239 = vunpack.c.h.b16 %v120
    %v240 = vunpack.c.l.b16 %v121
    %v241 = vunpack.c.h.b16 %v121
    %v242 = vunpack.c.l.b16 %v122
    %v243 = vunpack.c.h.b16 %v122
    %v244 = vunpack.c.l.b16 %v123
    %v245 = vunpack.c.h.b16 %v123
    %v246 = vunpack.c.l.b16 %v124
    %v247 = vunpack.c.h.b16 %v124
    %v248 = vunpack.c.l.b16 %v125
    %v249 = vunpack.c.h.b16 %v125
    %v250 = vunpack.c.l.b16 %v126
    %v251 = vunpack.c.h.b16 %v126
    %v252 = vunpack.c.l.b16 %v127
    %v253 = vunpack.c.h.b16 %v127
    %v254 = vunpack.c.l.b16 %v128
    %v255 = vunpack.c.h.b16 %v128
    %v256 = vunpack.c.l.b16 %v129
    %v257 = vunpack.c.h.b16 %v129
    %v258 = vunpack.c.l.b16 %v130
    %v259 = vunpack.c.h.b16 %v130
    %v260 = vunpack.c.l.b16 %v131
    %v261 = vunpack.c.h.b16 %v131
    %v262 = vunpack.c.l.b16 %v132
    %v263 = vunpack.c.h.b16 %v132
    %v264 = vunpack.c.l.b16 %v133
    %v265 = vunpack.c.h.b16 %v133
    %v266 = vunpack.c.l.b16 %v134
    %v267 = vunpack.c.h.b16 %v134
    %v268 = vunpack.c.l.b16 %v135
    %v269 = vunpack.c.h.b16 %v135
    %v270 = vunpack.c.l.b16 %v136
    %v271 = vunpack.c.h.b16 %v136
    %v272 = vunpack.c.l.b16 %v137
    %v273 = vunpack.c.h.b16 %v137
    %v274 = vpack.c.b16 %v212, %v210
    %v275 = vpack.c.b16 %v213, %v211
    %v276 = vpack.c.b16 %v216, %v214
    %v277 = vpack.c.b16 %v217, %v215
    %v278 = vpack.c.b16 %v220, %v218
    %v279 = vpack.c.b16 %v221, %v219
    %v280 = vpack.c.b16 %v224, %v222
    %v281 = vpack.c.b16 %v225, %v223
    %v282 = vpack.c.b16 %v228, %v226
    %v283 = vpack.c.b16 %v229, %v227
    %v284 = vpack.c.b16 %v232, %v230
    %v285 = vpack.c.b16 %v233, %v231
    %v286 = vpack.c.b16 %v236, %v234
    %v287 = vpack.c.b16 %v237, %v235
    %v288 = vpack.c.b16 %v240, %v238
    %v289 = vpack.c.b16 %v241, %v239
    %v290 = vpack.c.b16 %v244, %v242
    %v291 = vpack.c.b16 %v245, %v243
    %v292 = vpack.c.b16 %v248, %v246
    %v293 = vpack.c.b16 %v249, %v247
    %v294 = vpack.c.b16 %v252, %v250
    %v295 = vpack.c.b16 %v253, %v251
    %v296 = vpack.c.b16 %v256, %v254
    %v297 = vpack.c.b16 %v257, %v255
    %v298 = vpack.c.b16 %v260, %v258
    %v299 = vpack.c.b16 %v261, %v259
    %v300 = vpack.c.b16 %v264, %v262
    %v301 = vpack.c.b16 %v265, %v263
    %v302 = vpack.c.b16 %v268, %v266
    %v303 = vpack.c.b16 %v269, %v267
    %v304 = vpack.c.b16 %v272, %v270
    %v305 = vpack.c.b16 %v273, %v271
    %338 = vmatpush.bf16.msra.mxu0 %v288
    %339 = vmatpush.bf16.msra.mxu0 %v286
    %340 = vmatpush.bf16.msra.mxu0 %v284
    %341 = vmatpush.bf16.msra.mxu0 %v282
    %342 = vmatpush.bf16.msra.mxu0 %v280
    %343 = vmatpush.bf16.msra.mxu0 %v278
    %344 = vmatpush.bf16.msra.mxu0 %v276
    %345 = vmatpush.bf16.msra.mxu0 %v274
    %346 = vmatmul.bf16.gmra.mxu0 %v162
    %v347 = vpop.f32.mrf.mxu0
    %v348 = vadd.f32 0.0, %v347
    %v349 = vpop.f32.mrf.mxu0
    %v350 = vadd.f32 0.0, %v349
    %351 = vmatmul.bf16.gmra.mxu0 %v164
    %v352 = vpop.f32.mrf.mxu0
    %v353 = vadd.f32 0.0, %v352
    %v354 = vpop.f32.mrf.mxu0
    %v355 = vadd.f32 0.0, %v354
    %356 = vmatmul.bf16.gmra.mxu0 %v166
    %v357 = vpop.f32.mrf.mxu0
    %v358 = vadd.f32 0.0, %v357
    %v359 = vpop.f32.mrf.mxu0
    %v360 = vadd.f32 0.0, %v359
    %361 = vmatmul.bf16.gmra.mxu0 %v168
    %v362 = vpop.f32.mrf.mxu0
    %v363 = vadd.f32 0.0, %v362
    %v364 = vpop.f32.mrf.mxu0
    %v365 = vadd.f32 0.0, %v364
    %366 = vdwg.mxu0
    %367 = vmatpush.bf16.msra.mxu0 %v304
    %368 = vmatpush.bf16.msra.mxu0 %v302
    %369 = vmatpush.bf16.msra.mxu0 %v300
    %370 = vmatpush.bf16.msra.mxu0 %v298
    %371 = vmatpush.bf16.msra.mxu0 %v296
    %372 = vmatpush.bf16.msra.mxu0 %v294
    %373 = vmatpush.bf16.msra.mxu0 %v292
    %374 = vmatpush.bf16.msra.mxu0 %v290
    %375 = vmatmul.bf16.gmra.mxu0 %v163
    %v376 = vpop.f32.mrf.mxu0
    %v377 = vadd.f32 %v348, %v376
    %v378 = vpop.f32.mrf.mxu0
    %v379 = vadd.f32 %v350, %v378
    %380 = vmatmul.bf16.gmra.mxu0 %v165
    %v381 = vpop.f32.mrf.mxu0
    %v382 = vadd.f32 %v353, %v381
    %v383 = vpop.f32.mrf.mxu0
    %v384 = vadd.f32 %v355, %v383
    %385 = vmatmul.bf16.gmra.mxu0 %v167
    %v386 = vpop.f32.mrf.mxu0
    %v387 = vadd.f32 %v358, %v386
    %v388 = vpop.f32.mrf.mxu0
    %v389 = vadd.f32 %v360, %v388
    %390 = vmatmul.bf16.gmra.mxu0 %v169
    %v391 = vpop.f32.mrf.mxu0
    %v392 = vadd.f32 %v363, %v391
    %v393 = vpop.f32.mrf.mxu0
    %v394 = vadd.f32 %v365, %v393
    %395 = vdwg.mxu0
    %396 = vmatpush.bf16.msra.mxu0 %v289
    %397 = vmatpush.bf16.msra.mxu0 %v287
    %398 = vmatpush.bf16.msra.mxu0 %v285
    %399 = vmatpush.bf16.msra.mxu0 %v283
    %400 = vmatpush.bf16.msra.mxu0 %v281
    %401 = vmatpush.bf16.msra.mxu0 %v279
    %402 = vmatpush.bf16.msra.mxu0 %v277
    %403 = vmatpush.bf16.msra.mxu0 %v275
    %404 = vmatmul.bf16.gmra.mxu0 %v162
    %v405 = vpop.f32.mrf.mxu0
    %v406 = vadd.f32 0.0, %v405
    %v407 = vpop.f32.mrf.mxu0
    %v408 = vadd.f32 0.0, %v407
    %409 = vmatmul.bf16.gmra.mxu0 %v164
    %v410 = vpop.f32.mrf.mxu0
    %v411 = vadd.f32 0.0, %v410
    %v412 = vpop.f32.mrf.mxu0
    %v413 = vadd.f32 0.0, %v412
    %414 = vmatmul.bf16.gmra.mxu0 %v166
    %v415 = vpop.f32.mrf.mxu0
    %v416 = vadd.f32 0.0, %v415
    %v417 = vpop.f32.mrf.mxu0
    %v418 = vadd.f32 0.0, %v417
    %419 = vmatmul.bf16.gmra.mxu0 %v168
    %v420 = vpop.f32.mrf.mxu0
    %v421 = vadd.f32 0.0, %v420
    %v422 = vpop.f32.mrf.mxu0
    %v423 = vadd.f32 0.0, %v422
    %424 = vdwg.mxu0
    %425 = vmatpush.bf16.msra.mxu0 %v305
    %426 = vmatpush.bf16.msra.mxu0 %v303
    %427 = vmatpush.bf16.msra.mxu0 %v301
    %428 = vmatpush.bf16.msra.mxu0 %v299
    %429 = vmatpush.bf16.msra.mxu0 %v297
    %430 = vmatpush.bf16.msra.mxu0 %v295
    %431 = vmatpush.bf16.msra.mxu0 %v293
    %432 = vmatpush.bf16.msra.mxu0 %v291
    %433 = vmatmul.bf16.gmra.mxu0 %v163
    %v434 = vpop.f32.mrf.mxu0
    %v435 = vadd.f32 %v406, %v434
    %v436 = vpop.f32.mrf.mxu0
    %v437 = vadd.f32 %v408, %v436
    %438 = vmatmul.bf16.gmra.mxu0 %v165
    %v439 = vpop.f32.mrf.mxu0
    %v440 = vadd.f32 %v411, %v439
    %v441 = vpop.f32.mrf.mxu0
    %v442 = vadd.f32 %v413, %v441
    %443 = vmatmul.bf16.gmra.mxu0 %v167
    %v444 = vpop.f32.mrf.mxu0
    %v445 = vadd.f32 %v416, %v444
    %v446 = vpop.f32.mrf.mxu0
    %v447 = vadd.f32 %v418, %v446
    %448 = vmatmul.bf16.gmra.mxu0 %v169
    %v449 = vpop.f32.mrf.mxu0
    %v450 = vadd.f32 %v421, %v449
    %v451 = vpop.f32.mrf.mxu0
    %v452 = vadd.f32 %v423, %v451
    %453 = vdwg.mxu0
    %v454 = vadd.f32 %v377, %v379
    %v455 = vadd.f32 %v454, %v382
    %v456 = vadd.f32 %v455, %v384
    %v457 = vadd.f32 %v456, %v387
    %v458 = vadd.f32 %v457, %v389
    %v459 = vadd.f32 %v458, %v392
    %v460 = vadd.f32 %v459, %v394
    %v461 = vrot.slane %v460, 4
    %v462 = vadd.f32 %v460, %v461
    %v463 = vrot.slane %v462, 2
    %v464 = vadd.f32 %v462, %v463
    %v465 = vrot.slane %v464, 1
    %v466 = vadd.f32 %v464, %v465
    %v467 = vadd.f32 %v435, %v437
    %v468 = vadd.f32 %v467, %v440
    %v469 = vadd.f32 %v468, %v442
    %v470 = vadd.f32 %v469, %v445
    %v471 = vadd.f32 %v470, %v447
    %v472 = vadd.f32 %v471, %v450
    %v473 = vadd.f32 %v472, %v452
    %v474 = vrot.slane %v473, 4
    %v475 = vadd.f32 %v473, %v474
    %v476 = vrot.slane %v475, 2
    %v477 = vadd.f32 %v475, %v476
    %v478 = vrot.slane %v477, 1
    %v479 = vadd.f32 %v477, %v478
    %v480 = vmul.f32 %v466, 0.015625
    %v481 = vmul.f32 %v479, 0.015625
    %v482 = vsub.f32 %v377, %v480
    %v483 = vsub.f32 %v435, %v481
    %v484 = vsub.f32 %v379, %v480
    %v485 = vsub.f32 %v437, %v481
    %v486 = vsub.f32 %v382, %v480
    %v487 = vsub.f32 %v440, %v481
    %v488 = vsub.f32 %v384, %v480
    %v489 = vsub.f32 %v442, %v481
    %v490 = vsub.f32 %v387, %v480
    %v491 = vsub.f32 %v445, %v481
    %v492 = vsub.f32 %v389, %v480
    %v493 = vsub.f32 %v447, %v481
    %v494 = vsub.f32 %v392, %v480
    %v495 = vsub.f32 %v450, %v481
    %v496 = vsub.f32 %v394, %v480
    %v497 = vsub.f32 %v452, %v481
    %v498 = vmul.f32 %v482, %v482
    %v499 = vmul.f32 %v483, %v483
    %v500 = vmul.f32 %v484, %v484
    %v501 = vmul.f32 %v485, %v485
    %v502 = vmul.f32 %v486, %v486
    %v503 = vmul.f32 %v487, %v487
    %v504 = vmul.f32 %v488, %v488
    %v505 = vmul.f32 %v489, %v489
    %v506 = vmul.f32 %v490, %v490
    %v507 = vmul.f32 %v491, %v491
    %v508 = vmul.f32 %v492, %v492
    %v509 = vmul.f32 %v493, %v493
    %v510 = vmul.f32 %v494, %v494
    %v511 = vmul.f32 %v495, %v495
    %v512 = vmul.f32 %v496, %v496
    %v513 = vmul.f32 %v497, %v497
    %v514 = vadd.f32 %v498, %v500
    %v515 = vadd.f32 %v514, %v502
    %v516 = vadd.f32 %v515, %v504
    %v517 = vadd.f32 %v516, %v506
    %v518 = vadd.f32 %v517, %v508
    %v519 = vadd.f32 %v518, %v510
    %v520 = vadd.f32 %v519, %v512
    %v521 = vrot.slane %v520, 4
    %v522 = vadd.f32 %v520, %v521
    %v523 = vrot.slane %v522, 2
    %v524 = vadd.f32 %v522, %v523
    %v525 = vrot.slane %v524, 1
    %v526 = vadd.f32 %v524, %v525
    %v527 = vadd.f32 %v499, %v501
    %v528 = vadd.f32 %v527, %v503
    %v529 = vadd.f32 %v528, %v505
    %v530 = vadd.f32 %v529, %v507
    %v531 = vadd.f32 %v530, %v509
    %v532 = vadd.f32 %v531, %v511
    %v533 = vadd.f32 %v532, %v513
    %v534 = vrot.slane %v533, 4
    %v535 = vadd.f32 %v533, %v534
    %v536 = vrot.slane %v535, 2
    %v537 = vadd.f32 %v535, %v536
    %v538 = vrot.slane %v537, 1
    %v539 = vadd.f32 %v537, %v538
    %v540 = vmul.f32 %v526, 0.015625
    %v541 = vmul.f32 %v539, 0.015625
    %v542 = vld [vmem:[#allocation7] sm:$0x3]
    %v543 = vadd.f32 %v540, 1e-05
    %v544 = vadd.f32 %v541, 1e-05
    %v545 = vrsqrt.pop %v543
    %v546 = vmul.f32 %v545, %v543
    %v547 = vmul.f32 %v546, %v545
    %v548 = vmul.f32 0.5, %v547
    %v549 = vsub.f32 1.5, %v548
    %v550 = vmul.f32 %v545, %v549
    %vm551 = vweird.f32 %v543
    %vm552 = vweird.f32 %v545
    %vm553 = vmor %vm551, %vm552
    %v554 = vsel %vm553, %v545, %v550
    %v555 = vrsqrt.pop %v544
    %v556 = vmul.f32 %v555, %v544
    %v557 = vmul.f32 %v556, %v555
    %v558 = vmul.f32 0.5, %v557
    %v559 = vsub.f32 1.5, %v558
    %v560 = vmul.f32 %v555, %v559
    %vm561 = vweird.f32 %v544
    %vm562 = vweird.f32 %v555
    %vm563 = vmor %vm561, %vm562
    %v564 = vsel %vm563, %v555, %v560
    %v567 = vrot.slane %v564, 7
    %vm568 = vcmask 1040384
    %v569 = vsel %vm568, %v554, %v567
    %v571 = vmul.f32 %v542, %v569
    %v573 = vperm.slane %v571, 0
    %v574 = vperm.slane %v571, 1
    %v577 = vmul.f32 %v482, %v573
    %v578 = vmul.f32 %v483, %v574
    %v579 = vmul.f32 %v484, %v573
    %v580 = vmul.f32 %v485, %v574
    %v581 = vmul.f32 %v486, %v573
    %v582 = vmul.f32 %v487, %v574
    %v583 = vmul.f32 %v488, %v573
    %v584 = vmul.f32 %v489, %v574
    %v585 = vmul.f32 %v490, %v573
    %v586 = vmul.f32 %v491, %v574
    %v587 = vmul.f32 %v492, %v573
    %v588 = vmul.f32 %v493, %v574
    %v589 = vmul.f32 %v494, %v573
    %v590 = vmul.f32 %v495, %v574
    %v591 = vmul.f32 %v496, %v573
    %v592 = vmul.f32 %v497, %v574
    %v593 = vld [vmem:[#allocation8] sm:$0x3]
    %v595 = vperm.slane %v593, 0
    %v596 = vperm.slane %v593, 1
    %v599 = vadd.f32 %v577, %v595
    %v600 = vadd.f32 %v578, %v596
    %v601 = vadd.f32 %v579, %v595
    %v602 = vadd.f32 %v580, %v596
    %v603 = vadd.f32 %v581, %v595
    %v604 = vadd.f32 %v582, %v596
    %v605 = vadd.f32 %v583, %v595
    %v606 = vadd.f32 %v584, %v596
    %v607 = vadd.f32 %v585, %v595
    %v608 = vadd.f32 %v586, %v596
    %v609 = vadd.f32 %v587, %v595
    %v610 = vadd.f32 %v588, %v596
    %v611 = vadd.f32 %v589, %v595
    %v612 = vadd.f32 %v590, %v596
    %v613 = vadd.f32 %v591, %v595
    %v614 = vadd.f32 %v592, %v596
    %v615 = vmax.f32 %v599, 0.0
    %v616 = vmax.f32 %v600, 0.0
    %v617 = vmax.f32 %v601, 0.0
    %v618 = vmax.f32 %v602, 0.0
    %v619 = vmax.f32 %v603, 0.0
    %v620 = vmax.f32 %v604, 0.0
    %v621 = vmax.f32 %v605, 0.0
    %v622 = vmax.f32 %v606, 0.0
    %v623 = vmax.f32 %v607, 0.0
    %v624 = vmax.f32 %v608, 0.0
    %v625 = vmax.f32 %v609, 0.0
    %v626 = vmax.f32 %v610, 0.0
    %v627 = vmax.f32 %v611, 0.0
    %v628 = vmax.f32 %v612, 0.0
    %v629 = vmax.f32 %v613, 0.0
    %v630 = vmax.f32 %v614, 0.0
    %v631 = vpack.c.bf16 %v617, %v615
    %v632 = vpack.c.bf16 %v618, %v616
    %v633 = vpack.c.bf16 %v621, %v619
    %v634 = vpack.c.bf16 %v622, %v620
    %v635 = vpack.c.bf16 %v625, %v623
    %v636 = vpack.c.bf16 %v626, %v624
    %v637 = vpack.c.bf16 %v629, %v627
    %v638 = vpack.c.bf16 %v630, %v628
    %v639 = vld [vmem:[#allocation10] sm:$0xff]
    %v640 = vld [vmem:[#allocation10 + $0x8] sm:$0xff]
    %v641 = vld [vmem:[#allocation10 + $0x10] sm:$0xff]
    %v642 = vld [vmem:[#allocation10 + $0x18] sm:$0xff]
    %v643 = vld [vmem:[#allocation10 + $0x20] sm:$0xff]
    %v644 = vld [vmem:[#allocation10 + $0x28] sm:$0xff]
    %v645 = vld [vmem:[#allocation10 + $0x30] sm:$0xff]
    %v646 = vld [vmem:[#allocation10 + $0x38] sm:$0xff]
    %v647 = vld [vmem:[#allocation10 + $0x40] sm:$0xff]
    %v648 = vld [vmem:[#allocation10 + $0x48] sm:$0xff]
    %v649 = vld [vmem:[#allocation10 + $0x50] sm:$0xff]
    %v650 = vld [vmem:[#allocation10 + $0x58] sm:$0xff]
    %v651 = vld [vmem:[#allocation10 + $0x60] sm:$0xff]
    %v652 = vld [vmem:[#allocation10 + $0x68] sm:$0xff]
    %v653 = vld [vmem:[#allocation10 + $0x70] sm:$0xff]
    %v654 = vld [vmem:[#allocation10 + $0x78] sm:$0xff]
    %v655 = vld [vmem:[#allocation10 + $0x80] sm:$0xff]
    %v656 = vld [vmem:[#allocation10 + $0x88] sm:$0xff]
    %v657 = vld [vmem:[#allocation10 + $0x90] sm:$0xff]
    %v658 = vld [vmem:[#allocation10 + $0x98] sm:$0xff]
    %v659 = vld [vmem:[#allocation10 + $0xa0] sm:$0xff]
    %v660 = vld [vmem:[#allocation10 + $0xa8] sm:$0xff]
    %v661 = vld [vmem:[#allocation10 + $0xb0] sm:$0xff]
    %v662 = vld [vmem:[#allocation10 + $0xb8] sm:$0xff]
    %v663 = vld [vmem:[#allocation10 + $0xc0] sm:$0xff]
    %v664 = vld [vmem:[#allocation10 + $0xc8] sm:$0xff]
    %v665 = vld [vmem:[#allocation10 + $0xd0] sm:$0xff]
    %v666 = vld [vmem:[#allocation10 + $0xd8] sm:$0xff]
    %v667 = vld [vmem:[#allocation10 + $0xe0] sm:$0xff]
    %v668 = vld [vmem:[#allocation10 + $0xe8] sm:$0xff]
    %v669 = vld [vmem:[#allocation10 + $0xf0] sm:$0xff]
    %v670 = vld [vmem:[#allocation10 + $0xf8] sm:$0xff]
    %v671 = vld [vmem:[#allocation10 + $0x100] sm:$0xff]
    %v672 = vld [vmem:[#allocation10 + $0x108] sm:$0xff]
    %v673 = vld [vmem:[#allocation10 + $0x110] sm:$0xff]
    %v674 = vld [vmem:[#allocation10 + $0x118] sm:$0xff]
    %v675 = vld [vmem:[#allocation10 + $0x120] sm:$0xff]
    %v676 = vld [vmem:[#allocation10 + $0x128] sm:$0xff]
    %v677 = vld [vmem:[#allocation10 + $0x130] sm:$0xff]
    %v678 = vld [vmem:[#allocation10 + $0x138] sm:$0xff]
    %v679 = vld [vmem:[#allocation10 + $0x140] sm:$0xff]
    %v680 = vld [vmem:[#allocation10 + $0x148] sm:$0xff]
    %v681 = vld [vmem:[#allocation10 + $0x150] sm:$0xff]
    %v682 = vld [vmem:[#allocation10 + $0x158] sm:$0xff]
    %v683 = vld [vmem:[#allocation10 + $0x160] sm:$0xff]
    %v684 = vld [vmem:[#allocation10 + $0x168] sm:$0xff]
    %v685 = vld [vmem:[#allocation10 + $0x170] sm:$0xff]
    %v686 = vld [vmem:[#allocation10 + $0x178] sm:$0xff]
    %v687 = vld [vmem:[#allocation10 + $0x180] sm:$0xff]
    %v688 = vld [vmem:[#allocation10 + $0x188] sm:$0xff]
    %v689 = vld [vmem:[#allocation10 + $0x190] sm:$0xff]
    %v690 = vld [vmem:[#allocation10 + $0x198] sm:$0xff]
    %v691 = vld [vmem:[#allocation10 + $0x1a0] sm:$0xff]
    %v692 = vld [vmem:[#allocation10 + $0x1a8] sm:$0xff]
    %v693 = vld [vmem:[#allocation10 + $0x1b0] sm:$0xff]
    %v694 = vld [vmem:[#allocation10 + $0x1b8] sm:$0xff]
    %v695 = vld [vmem:[#allocation10 + $0x1c0] sm:$0xff]
    %v696 = vld [vmem:[#allocation10 + $0x1c8] sm:$0xff]
    %v697 = vld [vmem:[#allocation10 + $0x1d0] sm:$0xff]
    %v698 = vld [vmem:[#allocation10 + $0x1d8] sm:$0xff]
    %v699 = vld [vmem:[#allocation10 + $0x1e0] sm:$0xff]
    %v700 = vld [vmem:[#allocation10 + $0x1e8] sm:$0xff]
    %v701 = vld [vmem:[#allocation10 + $0x1f0] sm:$0xff]
    %v702 = vld [vmem:[#allocation10 + $0x1f8] sm:$0xff]
    %v767 = vunpack.c.l.b16 %v639
    %v768 = vunpack.c.h.b16 %v639
    %v769 = vunpack.c.l.b16 %v640
    %v770 = vunpack.c.h.b16 %v640
    %v771 = vunpack.c.l.b16 %v641
    %v772 = vunpack.c.h.b16 %v641
    %v773 = vunpack.c.l.b16 %v642
    %v774 = vunpack.c.h.b16 %v642
    %v775 = vunpack.c.l.b16 %v643
    %v776 = vunpack.c.h.b16 %v643
    %v777 = vunpack.c.l.b16 %v644
    %v778 = vunpack.c.h.b16 %v644
    %v779 = vunpack.c.l.b16 %v645
    %v780 = vunpack.c.h.b16 %v645
    %v781 = vunpack.c.l.b16 %v646
    %v782 = vunpack.c.h.b16 %v646
    %v783 = vunpack.c.l.b16 %v647
    %v784 = vunpack.c.h.b16 %v647
    %v785 = vunpack.c.l.b16 %v648
    %v786 = vunpack.c.h.b16 %v648
    %v787 = vunpack.c.l.b16 %v649
    %v788 = vunpack.c.h.b16 %v649
    %v789 = vunpack.c.l.b16 %v650
    %v790 = vunpack.c.h.b16 %v650
    %v791 = vunpack.c.l.b16 %v651
    %v792 = vunpack.c.h.b16 %v651
    %v793 = vunpack.c.l.b16 %v652
    %v794 = vunpack.c.h.b16 %v652
    %v795 = vunpack.c.l.b16 %v653
    %v796 = vunpack.c.h.b16 %v653
    %v797 = vunpack.c.l.b16 %v654
    %v798 = vunpack.c.h.b16 %v654
    %v799 = vunpack.c.l.b16 %v655
    %v800 = vunpack.c.h.b16 %v655
    %v801 = vunpack.c.l.b16 %v656
    %v802 = vunpack.c.h.b16 %v656
    %v803 = vunpack.c.l.b16 %v657
    %v804 = vunpack.c.h.b16 %v657
    %v805 = vunpack.c.l.b16 %v658
    %v806 = vunpack.c.h.b16 %v658
    %v807 = vunpack.c.l.b16 %v659
    %v808 = vunpack.c.h.b16 %v659
    %v809 = vunpack.c.l.b16 %v660
    %v810 = vunpack.c.h.b16 %v660
    %v811 = vunpack.c.l.b16 %v661
    %v812 = vunpack.c.h.b16 %v661
    %v813 = vunpack.c.l.b16 %v662
    %v814 = vunpack.c.h.b16 %v662
    %v815 = vunpack.c.l.b16 %v663
    %v816 = vunpack.c.h.b16 %v663
    %v817 = vunpack.c.l.b16 %v664
    %v818 = vunpack.c.h.b16 %v664
    %v819 = vunpack.c.l.b16 %v665
    %v820 = vunpack.c.h.b16 %v665
    %v821 = vunpack.c.l.b16 %v666
    %v822 = vunpack.c.h.b16 %v666
    %v823 = vunpack.c.l.b16 %v667
    %v824 = vunpack.c.h.b16 %v667
    %v825 = vunpack.c.l.b16 %v668
    %v826 = vunpack.c.h.b16 %v668
    %v827 = vunpack.c.l.b16 %v669
    %v828 = vunpack.c.h.b16 %v669
    %v829 = vunpack.c.l.b16 %v670
    %v830 = vunpack.c.h.b16 %v670
    %v831 = vunpack.c.l.b16 %v671
    %v832 = vunpack.c.h.b16 %v671
    %v833 = vunpack.c.l.b16 %v672
    %v834 = vunpack.c.h.b16 %v672
    %v835 = vunpack.c.l.b16 %v673
    %v836 = vunpack.c.h.b16 %v673
    %v837 = vunpack.c.l.b16 %v674
    %v838 = vunpack.c.h.b16 %v674
    %v839 = vunpack.c.l.b16 %v675
    %v840 = vunpack.c.h.b16 %v675
    %v841 = vunpack.c.l.b16 %v676
    %v842 = vunpack.c.h.b16 %v676
    %v843 = vunpack.c.l.b16 %v677
    %v844 = vunpack.c.h.b16 %v677
    %v845 = vunpack.c.l.b16 %v678
    %v846 = vunpack.c.h.b16 %v678
    %v847 = vunpack.c.l.b16 %v679
    %v848 = vunpack.c.h.b16 %v679
    %v849 = vunpack.c.l.b16 %v680
    %v850 = vunpack.c.h.b16 %v680
    %v851 = vunpack.c.l.b16 %v681
    %v852 = vunpack.c.h.b16 %v681
    %v853 = vunpack.c.l.b16 %v682
    %v854 = vunpack.c.h.b16 %v682
    %v855 = vunpack.c.l.b16 %v683
    %v856 = vunpack.c.h.b16 %v683
    %v857 = vunpack.c.l.b16 %v684
    %v858 = vunpack.c.h.b16 %v684
    %v859 = vunpack.c.l.b16 %v685
    %v860 = vunpack.c.h.b16 %v685
    %v861 = vunpack.c.l.b16 %v686
    %v862 = vunpack.c.h.b16 %v686
    %v863 = vunpack.c.l.b16 %v687
    %v864 = vunpack.c.h.b16 %v687
    %v865 = vunpack.c.l.b16 %v688
    %v866 = vunpack.c.h.b16 %v688
    %v867 = vunpack.c.l.b16 %v689
    %v868 = vunpack.c.h.b16 %v689
    %v869 = vunpack.c.l.b16 %v690
    %v870 = vunpack.c.h.b16 %v690
    %v871 = vunpack.c.l.b16 %v691
    %v872 = vunpack.c.h.b16 %v691
    %v873 = vunpack.c.l.b16 %v692
    %v874 = vunpack.c.h.b16 %v692
    %v875 = vunpack.c.l.b16 %v693
    %v876 = vunpack.c.h.b16 %v693
    %v877 = vunpack.c.l.b16 %v694
    %v878 = vunpack.c.h.b16 %v694
    %v879 = vunpack.c.l.b16 %v695
    %v880 = vunpack.c.h.b16 %v695
    %v881 = vunpack.c.l.b16 %v696
    %v882 = vunpack.c.h.b16 %v696
    %v883 = vunpack.c.l.b16 %v697
    %v884 = vunpack.c.h.b16 %v697
    %v885 = vunpack.c.l.b16 %v698
    %v886 = vunpack.c.h.b16 %v698
    %v887 = vunpack.c.l.b16 %v699
    %v888 = vunpack.c.h.b16 %v699
    %v889 = vunpack.c.l.b16 %v700
    %v890 = vunpack.c.h.b16 %v700
    %v891 = vunpack.c.l.b16 %v701
    %v892 = vunpack.c.h.b16 %v701
    %v893 = vunpack.c.l.b16 %v702
    %v894 = vunpack.c.h.b16 %v702
    %v895 = vpack.c.b16 %v771, %v767
    %v896 = vpack.c.b16 %v772, %v768
    %v897 = vpack.c.b16 %v773, %v769
    %v898 = vpack.c.b16 %v774, %v770
    %v899 = vpack.c.b16 %v779, %v775
    %v900 = vpack.c.b16 %v780, %v776
    %v901 = vpack.c.b16 %v781, %v777
    %v902 = vpack.c.b16 %v782, %v778
    %v903 = vpack.c.b16 %v787, %v783
    %v904 = vpack.c.b16 %v788, %v784
    %v905 = vpack.c.b16 %v789, %v785
    %v906 = vpack.c.b16 %v790, %v786
    %v907 = vpack.c.b16 %v795, %v791
    %v908 = vpack.c.b16 %v796, %v792
    %v909 = vpack.c.b16 %v797, %v793
    %v910 = vpack.c.b16 %v798, %v794
    %v911 = vpack.c.b16 %v803, %v799
    %v912 = vpack.c.b16 %v804, %v800
    %v913 = vpack.c.b16 %v805, %v801
    %v914 = vpack.c.b16 %v806, %v802
    %v915 = vpack.c.b16 %v811, %v807
    %v916 = vpack.c.b16 %v812, %v808
    %v917 = vpack.c.b16 %v813, %v809
    %v918 = vpack.c.b16 %v814, %v810
    %v919 = vpack.c.b16 %v819, %v815
    %v920 = vpack.c.b16 %v820, %v816
    %v921 = vpack.c.b16 %v821, %v817
    %v922 = vpack.c.b16 %v822, %v818
    %v923 = vpack.c.b16 %v827, %v823
    %v924 = vpack.c.b16 %v828, %v824
    %v925 = vpack.c.b16 %v829, %v825
    %v926 = vpack.c.b16 %v830, %v826
    %v927 = vpack.c.b16 %v835, %v831
    %v928 = vpack.c.b16 %v836, %v832
    %v929 = vpack.c.b16 %v837, %v833
    %v930 = vpack.c.b16 %v838, %v834
    %v931 = vpack.c.b16 %v843, %v839
    %v932 = vpack.c.b16 %v844, %v840
    %v933 = vpack.c.b16 %v845, %v841
    %v934 = vpack.c.b16 %v846, %v842
    %v935 = vpack.c.b16 %v851, %v847
    %v936 = vpack.c.b16 %v852, %v848
    %v937 = vpack.c.b16 %v853, %v849
    %v938 = vpack.c.b16 %v854, %v850
    %v939 = vpack.c.b16 %v859, %v855
    %v940 = vpack.c.b16 %v860, %v856
    %v941 = vpack.c.b16 %v861, %v857
    %v942 = vpack.c.b16 %v862, %v858
    %v943 = vpack.c.b16 %v867, %v863
    %v944 = vpack.c.b16 %v868, %v864
    %v945 = vpack.c.b16 %v869, %v865
    %v946 = vpack.c.b16 %v870, %v866
    %v947 = vpack.c.b16 %v875, %v871
    %v948 = vpack.c.b16 %v876, %v872
    %v949 = vpack.c.b16 %v877, %v873
    %v950 = vpack.c.b16 %v878, %v874
    %v951 = vpack.c.b16 %v883, %v879
    %v952 = vpack.c.b16 %v884, %v880
    %v953 = vpack.c.b16 %v885, %v881
    %v954 = vpack.c.b16 %v886, %v882
    %v955 = vpack.c.b16 %v891, %v887
    %v956 = vpack.c.b16 %v892, %v888
    %v957 = vpack.c.b16 %v893, %v889
    %v958 = vpack.c.b16 %v894, %v890
    %1023 = vmatpush.bf16.msra.mxu0 %v923
    %1024 = vmatpush.bf16.msra.mxu0 %v919
    %1025 = vmatpush.bf16.msra.mxu0 %v915
    %1026 = vmatpush.bf16.msra.mxu0 %v911
    %1027 = vmatpush.bf16.msra.mxu0 %v907
    %1028 = vmatpush.bf16.msra.mxu0 %v903
    %1029 = vmatpush.bf16.msra.mxu0 %v899
    %1030 = vmatpush.bf16.msra.mxu0 %v895
    %1031 = vmatmul.bf16.gmra.mxu0 %v631
    %v1032 = vpop.f32.mrf.mxu0
    %v1033 = vadd.f32 0.0, %v1032
    %v1034 = vpop.f32.mrf.mxu0
    %v1035 = vadd.f32 0.0, %v1034
    %1036 = vmatmul.bf16.gmra.mxu0 %v633
    %v1037 = vpop.f32.mrf.mxu0
    %v1038 = vadd.f32 0.0, %v1037
    %v1039 = vpop.f32.mrf.mxu0
    %v1040 = vadd.f32 0.0, %v1039
    %1041 = vmatmul.bf16.gmra.mxu0 %v635
    %v1042 = vpop.f32.mrf.mxu0
    %v1043 = vadd.f32 0.0, %v1042
    %v1044 = vpop.f32.mrf.mxu0
    %v1045 = vadd.f32 0.0, %v1044
    %1046 = vmatmul.bf16.gmra.mxu0 %v637
    %v1047 = vpop.f32.mrf.mxu0
    %v1048 = vadd.f32 0.0, %v1047
    %v1049 = vpop.f32.mrf.mxu0
    %v1050 = vadd.f32 0.0, %v1049
    %1051 = vdwg.mxu0
    %1052 = vmatpush.bf16.msra.mxu0 %v955
    %1053 = vmatpush.bf16.msra.mxu0 %v951
    %1054 = vmatpush.bf16.msra.mxu0 %v947
    %1055 = vmatpush.bf16.msra.mxu0 %v943
    %1056 = vmatpush.bf16.msra.mxu0 %v939
    %1057 = vmatpush.bf16.msra.mxu0 %v935
    %1058 = vmatpush.bf16.msra.mxu0 %v931
    %1059 = vmatpush.bf16.msra.mxu0 %v927
    %1060 = vmatmul.bf16.gmra.mxu0 %v632
    %v1061 = vpop.f32.mrf.mxu0
    %v1062 = vadd.f32 %v1033, %v1061
    %v1063 = vpop.f32.mrf.mxu0
    %v1064 = vadd.f32 %v1035, %v1063
    %1065 = vmatmul.bf16.gmra.mxu0 %v634
    %v1066 = vpop.f32.mrf.mxu0
    %v1067 = vadd.f32 %v1038, %v1066
    %v1068 = vpop.f32.mrf.mxu0
    %v1069 = vadd.f32 %v1040, %v1068
    %1070 = vmatmul.bf16.gmra.mxu0 %v636
    %v1071 = vpop.f32.mrf.mxu0
    %v1072 = vadd.f32 %v1043, %v1071
    %v1073 = vpop.f32.mrf.mxu0
    %v1074 = vadd.f32 %v1045, %v1073
    %1075 = vmatmul.bf16.gmra.mxu0 %v638
    %v1076 = vpop.f32.mrf.mxu0
    %v1077 = vadd.f32 %v1048, %v1076
    %v1078 = vpop.f32.mrf.mxu0
    %v1079 = vadd.f32 %v1050, %v1078
    %1080 = vdwg.mxu0
    %1081 = vmatpush.bf16.msra.mxu0 %v924
    %1082 = vmatpush.bf16.msra.mxu0 %v920
    %1083 = vmatpush.bf16.msra.mxu0 %v916
    %1084 = vmatpush.bf16.msra.mxu0 %v912
    %1085 = vmatpush.bf16.msra.mxu0 %v908
    %1086 = vmatpush.bf16.msra.mxu0 %v904
    %1087 = vmatpush.bf16.msra.mxu0 %v900
    %1088 = vmatpush.bf16.msra.mxu0 %v896
    %1089 = vmatmul.bf16.gmra.mxu0 %v631
    %v1090 = vpop.f32.mrf.mxu0
    %v1091 = vadd.f32 0.0, %v1090
    %v1092 = vpop.f32.mrf.mxu0
    %v1093 = vadd.f32 0.0, %v1092
    %1094 = vmatmul.bf16.gmra.mxu0 %v633
    %v1095 = vpop.f32.mrf.mxu0
    %v1096 = vadd.f32 0.0, %v1095
    %v1097 = vpop.f32.mrf.mxu0
    %v1098 = vadd.f32 0.0, %v1097
    %1099 = vmatmul.bf16.gmra.mxu0 %v635
    %v1100 = vpop.f32.mrf.mxu0
    %v1101 = vadd.f32 0.0, %v1100
    %v1102 = vpop.f32.mrf.mxu0
    %v1103 = vadd.f32 0.0, %v1102
    %1104 = vmatmul.bf16.gmra.mxu0 %v637
    %v1105 = vpop.f32.mrf.mxu0
    %v1106 = vadd.f32 0.0, %v1105
    %v1107 = vpop.f32.mrf.mxu0
    %v1108 = vadd.f32 0.0, %v1107
    %1109 = vdwg.mxu0
    %1110 = vmatpush.bf16.msra.mxu0 %v956
    %1111 = vmatpush.bf16.msra.mxu0 %v952
    %1112 = vmatpush.bf16.msra.mxu0 %v948
    %1113 = vmatpush.bf16.msra.mxu0 %v944
    %1114 = vmatpush.bf16.msra.mxu0 %v940
    %1115 = vmatpush.bf16.msra.mxu0 %v936
    %1116 = vmatpush.bf16.msra.mxu0 %v932
    %1117 = vmatpush.bf16.msra.mxu0 %v928
    %1118 = vmatmul.bf16.gmra.mxu0 %v632
    %v1119 = vpop.f32.mrf.mxu0
    %v1120 = vadd.f32 %v1091, %v1119
    %v1121 = vpop.f32.mrf.mxu0
    %v1122 = vadd.f32 %v1093, %v1121
    %1123 = vmatmul.bf16.gmra.mxu0 %v634
    %v1124 = vpop.f32.mrf.mxu0
    %v1125 = vadd.f32 %v1096, %v1124
    %v1126 = vpop.f32.mrf.mxu0
    %v1127 = vadd.f32 %v1098, %v1126
    %1128 = vmatmul.bf16.gmra.mxu0 %v636
    %v1129 = vpop.f32.mrf.mxu0
    %v1130 = vadd.f32 %v1101, %v1129
    %v1131 = vpop.f32.mrf.mxu0
    %v1132 = vadd.f32 %v1103, %v1131
    %1133 = vmatmul.bf16.gmra.mxu0 %v638
    %v1134 = vpop.f32.mrf.mxu0
    %v1135 = vadd.f32 %v1106, %v1134
    %v1136 = vpop.f32.mrf.mxu0
    %v1137 = vadd.f32 %v1108, %v1136
    %1138 = vdwg.mxu0
    %1139 = vmatpush.bf16.msra.mxu0 %v925
    %1140 = vmatpush.bf16.msra.mxu0 %v921
    %1141 = vmatpush.bf16.msra.mxu0 %v917
    %1142 = vmatpush.bf16.msra.mxu0 %v913
    %1143 = vmatpush.bf16.msra.mxu0 %v909
    %1144 = vmatpush.bf16.msra.mxu0 %v905
    %1145 = vmatpush.bf16.msra.mxu0 %v901
    %1146 = vmatpush.bf16.msra.mxu0 %v897
    %1147 = vmatmul.bf16.gmra.mxu0 %v631
    %v1148 = vpop.f32.mrf.mxu0
    %v1149 = vadd.f32 0.0, %v1148
    %v1150 = vpop.f32.mrf.mxu0
    %v1151 = vadd.f32 0.0, %v1150
    %1152 = vmatmul.bf16.gmra.mxu0 %v633
    %v1153 = vpop.f32.mrf.mxu0
    %v1154 = vadd.f32 0.0, %v1153
    %v1155 = vpop.f32.mrf.mxu0
    %v1156 = vadd.f32 0.0, %v1155
    %1157 = vmatmul.bf16.gmra.mxu0 %v635
    %v1158 = vpop.f32.mrf.mxu0
    %v1159 = vadd.f32 0.0, %v1158
    %v1160 = vpop.f32.mrf.mxu0
    %v1161 = vadd.f32 0.0, %v1160
    %1162 = vmatmul.bf16.gmra.mxu0 %v637
    %v1163 = vpop.f32.mrf.mxu0
    %v1164 = vadd.f32 0.0, %v1163
    %v1165 = vpop.f32.mrf.mxu0
    %v1166 = vadd.f32 0.0, %v1165
    %1167 = vdwg.mxu0
    %1168 = vmatpush.bf16.msra.mxu0 %v957
    %1169 = vmatpush.bf16.msra.mxu0 %v953
    %1170 = vmatpush.bf16.msra.mxu0 %v949
    %1171 = vmatpush.bf16.msra.mxu0 %v945
    %1172 = vmatpush.bf16.msra.mxu0 %v941
    %1173 = vmatpush.bf16.msra.mxu0 %v937
    %1174 = vmatpush.bf16.msra.mxu0 %v933
    %1175 = vmatpush.bf16.msra.mxu0 %v929
    %1176 = vmatmul.bf16.gmra.mxu0 %v632
    %v1177 = vpop.f32.mrf.mxu0
    %v1178 = vadd.f32 %v1149, %v1177
    %v1179 = vpop.f32.mrf.mxu0
    %v1180 = vadd.f32 %v1151, %v1179
    %1181 = vmatmul.bf16.gmra.mxu0 %v634
    %v1182 = vpop.f32.mrf.mxu0
    %v1183 = vadd.f32 %v1154, %v1182
    %v1184 = vpop.f32.mrf.mxu0
    %v1185 = vadd.f32 %v1156, %v1184
    %1186 = vmatmul.bf16.gmra.mxu0 %v636
    %v1187 = vpop.f32.mrf.mxu0
    %v1188 = vadd.f32 %v1159, %v1187
    %v1189 = vpop.f32.mrf.mxu0
    %v1190 = vadd.f32 %v1161, %v1189
    %1191 = vmatmul.bf16.gmra.mxu0 %v638
    %v1192 = vpop.f32.mrf.mxu0
    %v1193 = vadd.f32 %v1164, %v1192
    %v1194 = vpop.f32.mrf.mxu0
    %v1195 = vadd.f32 %v1166, %v1194
    %1196 = vdwg.mxu0
    %1197 = vmatpush.bf16.msra.mxu0 %v926
    %1198 = vmatpush.bf16.msra.mxu0 %v922
    %1199 = vmatpush.bf16.msra.mxu0 %v918
    %1200 = vmatpush.bf16.msra.mxu0 %v914
    %1201 = vmatpush.bf16.msra.mxu0 %v910
    %1202 = vmatpush.bf16.msra.mxu0 %v906
    %1203 = vmatpush.bf16.msra.mxu0 %v902
    %1204 = vmatpush.bf16.msra.mxu0 %v898
    %1205 = vmatmul.bf16.gmra.mxu0 %v631
    %v1206 = vpop.f32.mrf.mxu0
    %v1207 = vadd.f32 0.0, %v1206
    %v1208 = vpop.f32.mrf.mxu0
    %v1209 = vadd.f32 0.0, %v1208
    %1210 = vmatmul.bf16.gmra.mxu0 %v633
    %v1211 = vpop.f32.mrf.mxu0
    %v1212 = vadd.f32 0.0, %v1211
    %v1213 = vpop.f32.mrf.mxu0
    %v1214 = vadd.f32 0.0, %v1213
    %1215 = vmatmul.bf16.gmra.mxu0 %v635
    %v1216 = vpop.f32.mrf.mxu0
    %v1217 = vadd.f32 0.0, %v1216
    %v1218 = vpop.f32.mrf.mxu0
    %v1219 = vadd.f32 0.0, %v1218
    %1220 = vmatmul.bf16.gmra.mxu0 %v637
    %v1221 = vpop.f32.mrf.mxu0
    %v1222 = vadd.f32 0.0, %v1221
    %v1223 = vpop.f32.mrf.mxu0
    %v1224 = vadd.f32 0.0, %v1223
    %1225 = vdwg.mxu0
    %1226 = vmatpush.bf16.msra.mxu0 %v958
    %1227 = vmatpush.bf16.msra.mxu0 %v954
    %1228 = vmatpush.bf16.msra.mxu0 %v950
    %1229 = vmatpush.bf16.msra.mxu0 %v946
    %1230 = vmatpush.bf16.msra.mxu0 %v942
    %1231 = vmatpush.bf16.msra.mxu0 %v938
    %1232 = vmatpush.bf16.msra.mxu0 %v934
    %1233 = vmatpush.bf16.msra.mxu0 %v930
    %1234 = vmatmul.bf16.gmra.mxu0 %v632
    %v1235 = vpop.f32.mrf.mxu0
    %v1236 = vadd.f32 %v1207, %v1235
    %v1237 = vpop.f32.mrf.mxu0
    %v1238 = vadd.f32 %v1209, %v1237
    %1239 = vmatmul.bf16.gmra.mxu0 %v634
    %v1240 = vpop.f32.mrf.mxu0
    %v1241 = vadd.f32 %v1212, %v1240
    %v1242 = vpop.f32.mrf.mxu0
    %v1243 = vadd.f32 %v1214, %v1242
    %1244 = vmatmul.bf16.gmra.mxu0 %v636
    %v1245 = vpop.f32.mrf.mxu0
    %v1246 = vadd.f32 %v1217, %v1245
    %v1247 = vpop.f32.mrf.mxu0
    %v1248 = vadd.f32 %v1219, %v1247
    %1249 = vmatmul.bf16.gmra.mxu0 %v638
    %v1250 = vpop.f32.mrf.mxu0
    %v1251 = vadd.f32 %v1222, %v1250
    %v1252 = vpop.f32.mrf.mxu0
    %v1253 = vadd.f32 %v1224, %v1252
    %1254 = vdwg.mxu0
    %p1255 = scmp.eq.s32.totalorder 0, 0
    // Predicated region
    $region46: #{tpu_custom_call.1} parent=1 // pred_check
      %p1256 = pneg %p1255
    $region47: #{tpu_custom_call.1} parent=1 // pred_check_branch
      %1258 = sbr.rel (%p1256) target = $region49
    $region48: #{tpu_custom_call.1} parent=1 // pred_region
      %v1259 = vld [vmem:[%s5] sm:$0xf]
      %v1261 = vperm.slane %v1259, 0
      %v1262 = vperm.slane %v1259, 1
      %v1263 = vperm.slane %v1259, 2
      %v1264 = vperm.slane %v1259, 3
      %v1269 = vadd.f32 %v1062, %v1261
      %v1270 = vadd.f32 %v1120, %v1262
      %v1271 = vadd.f32 %v1178, %v1263
      %v1272 = vadd.f32 %v1236, %v1264
      %v1273 = vadd.f32 %v1064, %v1261
      %v1274 = vadd.f32 %v1122, %v1262
      %v1275 = vadd.f32 %v1180, %v1263
      %v1276 = vadd.f32 %v1238, %v1264
      %v1277 = vadd.f32 %v1067, %v1261
      %v1278 = vadd.f32 %v1125, %v1262
      %v1279 = vadd.f32 %v1183, %v1263
      %v1280 = vadd.f32 %v1241, %v1264
      %v1281 = vadd.f32 %v1069, %v1261
      %v1282 = vadd.f32 %v1127, %v1262
      %v1283 = vadd.f32 %v1185, %v1263
      %v1284 = vadd.f32 %v1243, %v1264
      %v1285 = vadd.f32 %v1072, %v1261
      %v1286 = vadd.f32 %v1130, %v1262
      %v1287 = vadd.f32 %v1188, %v1263
      %v1288 = vadd.f32 %v1246, %v1264
      %v1289 = vadd.f32 %v1074, %v1261
      %v1290 = vadd.f32 %v1132, %v1262
      %v1291 = vadd.f32 %v1190, %v1263
      %v1292 = vadd.f32 %v1248, %v1264
      %v1293 = vadd.f32 %v1077, %v1261
      %v1294 = vadd.f32 %v1135, %v1262
      %v1295 = vadd.f32 %v1193, %v1263
      %v1296 = vadd.f32 %v1251, %v1264
      %v1297 = vadd.f32 %v1079, %v1261
      %v1298 = vadd.f32 %v1137, %v1262
      %v1299 = vadd.f32 %v1195, %v1263
      %v1300 = vadd.f32 %v1253, %v1264
      %1301 = vst [vmem:[#allocation11] sm:$0xff] %v1269
      %1302 = vst [vmem:[#allocation11 + $0x8] sm:$0xff] %v1270
      %1303 = vst [vmem:[#allocation11 + $0x10] sm:$0xff] %v1271
      %1304 = vst [vmem:[#allocation11 + $0x18] sm:$0xff] %v1272
      %1305 = vst [vmem:[#allocation11 + $0x20] sm:$0xff] %v1273
      %1306 = vst [vmem:[#allocation11 + $0x28] sm:$0xff] %v1274
      %1307 = vst [vmem:[#allocation11 + $0x30] sm:$0xff] %v1275
      %1308 = vst [vmem:[#allocation11 + $0x38] sm:$0xff] %v1276
      %1309 = vst [vmem:[#allocation11 + $0x40] sm:$0xff] %v1277
      %1310 = vst [vmem:[#allocation11 + $0x48] sm:$0xff] %v1278
      %1311 = vst [vmem:[#allocation11 + $0x50] sm:$0xff] %v1279
      %1312 = vst [vmem:[#allocation11 + $0x58] sm:$0xff] %v1280
      %1313 = vst [vmem:[#allocation11 + $0x60] sm:$0xff] %v1281
      %1314 = vst [vmem:[#allocation11 + $0x68] sm:$0xff] %v1282
      %1315 = vst [vmem:[#allocation11 + $0x70] sm:$0xff] %v1283
      %1316 = vst [vmem:[#allocation11 + $0x78] sm:$0xff] %v1284
      %1317 = vst [vmem:[#allocation11 + $0x80] sm:$0xff] %v1285
      %1318 = vst [vmem:[#allocation11 + $0x88] sm:$0xff] %v1286
      %1319 = vst [vmem:[#allocation11 + $0x90] sm:$0xff] %v1287
      %1320 = vst [vmem:[#allocation11 + $0x98] sm:$0xff] %v1288
      %1321 = vst [vmem:[#allocation11 + $0xa0] sm:$0xff] %v1289
      %1322 = vst [vmem:[#allocation11 + $0xa8] sm:$0xff] %v1290
      %1323 = vst [vmem:[#allocation11 + $0xb0] sm:$0xff] %v1291
      %1324 = vst [vmem:[#allocation11 + $0xb8] sm:$0xff] %v1292
      %1325 = vst [vmem:[#allocation11 + $0xc0] sm:$0xff] %v1293
      %1326 = vst [vmem:[#allocation11 + $0xc8] sm:$0xff] %v1294
      %1327 = vst [vmem:[#allocation11 + $0xd0] sm:$0xff] %v1295
      %1328 = vst [vmem:[#allocation11 + $0xd8] sm:$0xff] %v1296
      %1329 = vst [vmem:[#allocation11 + $0xe0] sm:$0xff] %v1297
      %1330 = vst [vmem:[#allocation11 + $0xe8] sm:$0xff] %v1298
      %1331 = vst [vmem:[#allocation11 + $0xf0] sm:$0xff] %v1299
      %1332 = vst [vmem:[#allocation11 + $0xf8] sm:$0xff] %v1300
    $region49: #{tpu_custom_call.1} parent=1 // pred_fallthru
      _
    %p1333 = scmp.gt.s32.totalorder 0, 0
    // Predicated region
    $region50: #{tpu_custom_call.1} parent=1 // pred_check
      %p1334 = pneg %p1333
    $region51: #{tpu_custom_call.1} parent=1 // pred_check_branch
      %1336 = sbr.rel (%p1334) target = $region53
    $region52: #{tpu_custom_call.1} parent=1 // pred_region
      %v1337 = vld [vmem:[#allocation11] sm:$0xff]
      %v1338 = vld [vmem:[#allocation11 + $0x8] sm:$0xff]
      %v1339 = vld [vmem:[#allocation11 + $0x10] sm:$0xff]
      %v1340 = vld [vmem:[#allocation11 + $0x18] sm:$0xff]
      %v1341 = vld [vmem:[#allocation11 + $0x20] sm:$0xff]
      %v1342 = vld [vmem:[#allocation11 + $0x28] sm:$0xff]
      %v1343 = vld [vmem:[#allocation11 + $0x30] sm:$0xff]
      %v1344 = vld [vmem:[#allocation11 + $0x38] sm:$0xff]
      %v1345 = vld [vmem:[#allocation11 + $0x40] sm:$0xff]
      %v1346 = vld [vmem:[#allocation11 + $0x48] sm:$0xff]
      %v1347 = vld [vmem:[#allocation11 + $0x50] sm:$0xff]
      %v1348 = vld [vmem:[#allocation11 + $0x58] sm:$0xff]
      %v1349 = vld [vmem:[#allocation11 + $0x60] sm:$0xff]
      %v1350 = vld [vmem:[#allocation11 + $0x68] sm:$0xff]
      %v1351 = vld [vmem:[#allocation11 + $0x70] sm:$0xff]
      %v1352 = vld [vmem:[#allocation11 + $0x78] sm:$0xff]
      %v1353 = vld [vmem:[#allocation11 + $0x80] sm:$0xff]
      %v1354 = vld [vmem:[#allocation11 + $0x88] sm:$0xff]
      %v1355 = vld [vmem:[#allocation11 + $0x90] sm:$0xff]
      %v1356 = vld [vmem:[#allocation11 + $0x98] sm:$0xff]
      %v1357 = vld [vmem:[#allocation11 + $0xa0] sm:$0xff]
      %v1358 = vld [vmem:[#allocation11 + $0xa8] sm:$0xff]
      %v1359 = vld [vmem:[#allocation11 + $0xb0] sm:$0xff]
      %v1360 = vld [vmem:[#allocation11 + $0xb8] sm:$0xff]
      %v1361 = vld [vmem:[#allocation11 + $0xc0] sm:$0xff]
      %v1362 = vld [vmem:[#allocation11 + $0xc8] sm:$0xff]
      %v1363 = vld [vmem:[#allocation11 + $0xd0] sm:$0xff]
      %v1364 = vld [vmem:[#allocation11 + $0xd8] sm:$0xff]
      %v1365 = vld [vmem:[#allocation11 + $0xe0] sm:$0xff]
      %v1366 = vld [vmem:[#allocation11 + $0xe8] sm:$0xff]
      %v1367 = vld [vmem:[#allocation11 + $0xf0] sm:$0xff]
      %v1368 = vld [vmem:[#allocation11 + $0xf8] sm:$0xff]
      %v1369 = vadd.f32 %v1337, %v1062
      %v1370 = vadd.f32 %v1338, %v1120
      %v1371 = vadd.f32 %v1339, %v1178
      %v1372 = vadd.f32 %v1340, %v1236
      %v1373 = vadd.f32 %v1341, %v1064
      %v1374 = vadd.f32 %v1342, %v1122
      %v1375 = vadd.f32 %v1343, %v1180
      %v1376 = vadd.f32 %v1344, %v1238
      %v1377 = vadd.f32 %v1345, %v1067
      %v1378 = vadd.f32 %v1346, %v1125
      %v1379 = vadd.f32 %v1347, %v1183
      %v1380 = vadd.f32 %v1348, %v1241
      %v1381 = vadd.f32 %v1349, %v1069
      %v1382 = vadd.f32 %v1350, %v1127
      %v1383 = vadd.f32 %v1351, %v1185
      %v1384 = vadd.f32 %v1352, %v1243
      %v1385 = vadd.f32 %v1353, %v1072
      %v1386 = vadd.f32 %v1354, %v1130
      %v1387 = vadd.f32 %v1355, %v1188
      %v1388 = vadd.f32 %v1356, %v1246
      %v1389 = vadd.f32 %v1357, %v1074
      %v1390 = vadd.f32 %v1358, %v1132
      %v1391 = vadd.f32 %v1359, %v1190
      %v1392 = vadd.f32 %v1360, %v1248
      %v1393 = vadd.f32 %v1361, %v1077
      %v1394 = vadd.f32 %v1362, %v1135
      %v1395 = vadd.f32 %v1363, %v1193
      %v1396 = vadd.f32 %v1364, %v1251
      %v1397 = vadd.f32 %v1365, %v1079
      %v1398 = vadd.f32 %v1366, %v1137
      %v1399 = vadd.f32 %v1367, %v1195
      %v1400 = vadd.f32 %v1368, %v1253
      %1401 = vst [vmem:[#allocation11] sm:$0xff] %v1369
      %1402 = vst [vmem:[#allocation11 + $0x8] sm:$0xff] %v1370
      %1403 = vst [vmem:[#allocation11 + $0x10] sm:$0xff] %v1371
      %1404 = vst [vmem:[#allocation11 + $0x18] sm:$0xff] %v1372
      %1405 = vst [vmem:[#allocation11 + $0x20] sm:$0xff] %v1373
      %1406 = vst [vmem:[#allocation11 + $0x28] sm:$0xff] %v1374
      %1407 = vst [vmem:[#allocation11 + $0x30] sm:$0xff] %v1375
      %1408 = vst [vmem:[#allocation11 + $0x38] sm:$0xff] %v1376
      %1409 = vst [vmem:[#allocation11 + $0x40] sm:$0xff] %v1377
      %1410 = vst [vmem:[#allocation11 + $0x48] sm:$0xff] %v1378
      %1411 = vst [vmem:[#allocation11 + $0x50] sm:$0xff] %v1379
      %1412 = vst [vmem:[#allocation11 + $0x58] sm:$0xff] %v1380
      %1413 = vst [vmem:[#allocation11 + $0x60] sm:$0xff] %v1381
      %1414 = vst [vmem:[#allocation11 + $0x68] sm:$0xff] %v1382
      %1415 = vst [vmem:[#allocation11 + $0x70] sm:$0xff] %v1383
      %1416 = vst [vmem:[#allocation11 + $0x78] sm:$0xff] %v1384
      %1417 = vst [vmem:[#allocation11 + $0x80] sm:$0xff] %v1385
      %1418 = vst [vmem:[#allocation11 + $0x88] sm:$0xff] %v1386
      %1419 = vst [vmem:[#allocation11 + $0x90] sm:$0xff] %v1387
      %1420 = vst [vmem:[#allocation11 + $0x98] sm:$0xff] %v1388
      %1421 = vst [vmem:[#allocation11 + $0xa0] sm:$0xff] %v1389
      %1422 = vst [vmem:[#allocation11 + $0xa8] sm:$0xff] %v1390
      %1423 = vst [vmem:[#allocation11 + $0xb0] sm:$0xff] %v1391
      %1424 = vst [vmem:[#allocation11 + $0xb8] sm:$0xff] %v1392
      %1425 = vst [vmem:[#allocation11 + $0xc0] sm:$0xff] %v1393
      %1426 = vst [vmem:[#allocation11 + $0xc8] sm:$0xff] %v1394
      %1427 = vst [vmem:[#allocation11 + $0xd0] sm:$0xff] %v1395
      %1428 = vst [vmem:[#allocation11 + $0xd8] sm:$0xff] %v1396
      %1429 = vst [vmem:[#allocation11 + $0xe0] sm:$0xff] %v1397
      %1430 = vst [vmem:[#allocation11 + $0xe8] sm:$0xff] %v1398
      %1431 = vst [vmem:[#allocation11 + $0xf0] sm:$0xff] %v1399
      %1432 = vst [vmem:[#allocation11 + $0xf8] sm:$0xff] %v1400
    $region53: #{tpu_custom_call.1} parent=1 // pred_fallthru
      _
    // Predicated region
    $region54: #{tpu_custom_call.1} parent=1 // pred_check
      _
    $region55: #{tpu_custom_call.1} parent=1 // pred_check_branch
      %1434 = sbr.rel (0) target = $region57
    $region56: #{tpu_custom_call.1} parent=1 // pred_region
      %1436 = vsyncadd [#allocation4], 0
      %s1437 = sshll.u32 [#allocation11], 4
      %s1438 = int_to_ptr.vmem [resolvable:$true] %s1437
      %s1439 = sshll.u32 %s6, 4
      %s1440 = int_to_ptr.hbm [resolvable:$true] %s1439
      %1445 = dma.vmem_to_hbm [thread:$0]  %s1438, 4096, %s1440, [#allocation4], 512, 512, 32
    $region57: #{tpu_custom_call.1} parent=1 // pred_fallthru
      _
    // Predicated region
    $region58: #{tpu_custom_call.1} parent=1 // pred_check
      _
    $region59: #{tpu_custom_call.1} parent=1 // pred_check_branch
      %1447 = sbr.rel (0) target = $region61
    $region60: #{tpu_custom_call.1} parent=1 // pred_region
      %1449 = dma.done [#allocation4], 4096
    $region61: #{tpu_custom_call.1} parent=1 // pred_fallthru
      _
    %1450 = vsyncpa [#allocation3], 1
    %1451 = vsyncpa [#allocation6], 1
    %1452 = vsyncpa [#allocation9], 1
    %1453 = vsyncpa [#allocation4], 1

</llo_original>
